<compile_context>
chip_gen: v5e
topology: v5e:2x2
jax: 0.10.0
libtpu: 0.0.40
codegen_flags: <defaults>
</compile_context>

<pallas_src>
import functools

import jax
import jax.numpy as jnp
from jax.experimental import pallas as pl
from jax.experimental.pallas import tpu as pltpu

LANE = 128
_NEG_INF = -9e15


def _round_up(x, m):
    return ((x + m - 1) // m) * m


def _vmem_limit_bytes():
    """Generation-aware scoped-VMEM limit (~85% of physical, capped at 112 MiB)."""
    try:
        cap = int(pltpu.get_tpu_info().vmem_capacity_bytes)
    except Exception:
        cap = 64 << 20          # assume the smallest (v7x) VMEM if query fails
    return max(32 << 20, min(int(cap * 0.85), 112 << 20))


def _pick_row_tile(n_pad, *, resident_bytes, per_row_bytes, budget_bytes):
    """Largest power-of-two row tile dividing n_pad whose working set fits."""
    for t in (512, 256, 128, 64, 32, 16, 8):
        if t <= n_pad and n_pad % t == 0 and \
                resident_bytes + t * per_row_bytes <= budget_bytes:
            return t
    return 8


# ----------------------------------------------------------------------------
# Kernel A: per-row-tile projection  Wh = x @ W_pad ,  f = x @ a_proj   (MXU)
# ----------------------------------------------------------------------------
def _project_kernel(x_ref, w_ref, ap_ref, wh_ref, f_ref):
    x = x_ref[...]
    wh_ref[...] = jnp.dot(x, w_ref[...],
                          preferred_element_type=jnp.float32).astype(wh_ref.dtype)
    f_ref[...] = jnp.dot(x, ap_ref[...], preferred_element_type=jnp.float32)


def gat_project(x, w_pad, a_proj, *, tm, wh_dtype, vmem_limit):
    Np, Fin = x.shape
    Fp = w_pad.shape[1]
    wh, f = pl.pallas_call(
        _project_kernel,
        out_shape=(jax.ShapeDtypeStruct((Np, Fp), wh_dtype),
                   jax.ShapeDtypeStruct((Np, LANE), jnp.float32)),
        grid=(Np // tm,),
        in_specs=[
            pl.BlockSpec((tm, Fin), lambda i: (i, 0)),
            pl.BlockSpec((Fin, Fp), lambda i: (0, 0)),      # resident
            pl.BlockSpec((Fin, LANE), lambda i: (0, 0)),    # resident
        ],
        out_specs=(
            pl.BlockSpec((tm, Fp), lambda i: (i, 0)),
            pl.BlockSpec((tm, LANE), lambda i: (i, 0)),
        ),
        compiler_params=pltpu.CompilerParams(
            dimension_semantics=("parallel",),
            vmem_limit_bytes=vmem_limit),
        cost_estimate=pl.CostEstimate(
            flops=int(2 * Np * Fin * (Fp + LANE)),
            transcendentals=0,
            bytes_accessed=int(
                Np * Fin * x.dtype.itemsize
                + Fin * (Fp + LANE) * w_pad.dtype.itemsize
                + Np * Fp * jnp.dtype(wh_dtype).itemsize + Np * LANE * 4)),
    )(x, w_pad, a_proj)
    return wh, f


# ----------------------------------------------------------------------------
# Kernel B: per-row-tile masked softmax + aggregation
# ----------------------------------------------------------------------------
def _attention_kernel(f_ref, fdst_ref, bias_ref, wh_ref, *out_refs,
                      alpha, apply_elu, emit_att, matmul_dtype):
    f_src = f_ref[:, 0:1]                                    # (tm, 1)
    e = f_src + fdst_ref[...]                                # (tm, Np)
    e = jnp.where(e > 0, e, alpha * e)                       # LeakyReLU(alpha)
    e = e + bias_ref[...].astype(jnp.float32)                # additive adj mask

    m = jnp.max(e, axis=1, keepdims=True)                    # stable row softmax
    p = jnp.exp(e - m)
    s = jnp.sum(p, axis=1, keepdims=True)
    inv = 1.0 / s                                            # exact (parity with torch)

    if emit_att:
        att = p * inv
        out_refs[1][...] = att.astype(out_refs[1].dtype)
        hp = jnp.dot(att.astype(matmul_dtype), wh_ref[...],
                     preferred_element_type=jnp.float32)     # (tm, Fp)
    else:
        # Defer normalization: aggregate un-normalized p, rescale the small
        # (tm, Fp) result instead of the (tm, Np) weights (VPU-bound kernel).
        hp = jnp.dot(p.astype(matmul_dtype), wh_ref[...],
                     preferred_element_type=jnp.float32)
        hp = hp * inv

    if apply_elu:
        # clamp the unselected branch so exp never overflows
        hp = jnp.where(hp > 0, hp, jnp.exp(jnp.minimum(hp, 0.0)) - 1.0)
    out_refs[0][...] = hp.astype(out_refs[0].dtype)


def gat_attention(f, f_dst_row, bias, wh, *, alpha, apply_elu, emit_att, tm,
                  matmul_dtype, out_dtype, att_dtype, vmem_limit):
    Np = bias.shape[0]
    Fp = wh.shape[1]
    kernel = functools.partial(_attention_kernel, alpha=alpha, apply_elu=apply_elu,
                               emit_att=emit_att, matmul_dtype=matmul_dtype)

    out_shape = [jax.ShapeDtypeStruct((Np, Fp), out_dtype)]
    out_specs = [pl.BlockSpec((tm, Fp), lambda i: (i, 0))]
    if emit_att:
        out_shape.append(jax.ShapeDtypeStruct((Np, Np), att_dtype))
        out_specs.append(pl.BlockSpec((tm, Np), lambda i: (i, 0)))

    bytes_acc = (Np * Np * 2                                      # bf16 adjacency bias
                 + Np * LANE * 4 + Np * 4                         # f tiles + f_dst row
                 + Np * Fp * jnp.dtype(wh.dtype).itemsize         # resident Wh
                 + Np * Fp * jnp.dtype(out_dtype).itemsize
                 + (Np * Np * jnp.dtype(att_dtype).itemsize if emit_att else 0))
    results = pl.pallas_call(
        kernel,
        out_shape=tuple(out_shape),
        grid=(Np // tm,),
        in_specs=[
            pl.BlockSpec((tm, LANE), lambda i: (i, 0)),   # f tile (col 0 = f_src)
            pl.BlockSpec((1, Np), lambda i: (0, 0)),      # f_dst row, resident
            pl.BlockSpec((tm, Np), lambda i: (i, 0)),     # additive adjacency bias
            pl.BlockSpec((Np, Fp), lambda i: (0, 0)),     # Wh resident
        ],
        out_specs=tuple(out_specs),
        compiler_params=pltpu.CompilerParams(
            dimension_semantics=("parallel",),
            vmem_limit_bytes=vmem_limit),
        cost_estimate=pl.CostEstimate(
            flops=int(2 * Np * Np * Fp + 8 * Np * Np),
            transcendentals=int(Np * Np),
            bytes_accessed=int(bytes_acc)),
    )(f, f_dst_row, bias, wh)
    if emit_att:
        return results[0], results[1]
    return results[0], None


# ----------------------------------------------------------------------------
# One GraphAttentionLayer forward (eval mode).
# x and bias are already padded to Np (multiple of 128); returns the h_prime
# padded to a multiple of 128 columns and the (Np, Np) attention (or None).
# ----------------------------------------------------------------------------
def gat_layer(x, W, a, bias, *, alpha, apply_elu, emit_att, out_dtype,
              matmul_dtype=jnp.bfloat16, att_dtype=jnp.float32, vmem_limit=None):
    Np, Fin = x.shape
    Fout = W.shape[1]
    Fp = _round_up(Fout, LANE)
    if vmem_limit is None:
        vmem_limit = _vmem_limit_bytes()

    # Wrapper-side layout plumbing (one-time, tiny): lane-pad W and fold the
    # attention vector into an x-side projection  f = x @ (W @ [a_src|a_dst]).
    W_pad = jnp.zeros((Fin, Fp), jnp.float32).at[:, :Fout].set(W)
    a_src = W @ a[:Fout, 0]                 # (Fin,)
    a_dst = W @ a[Fout:, 0]                 # (Fin,)
    a_proj = jnp.zeros((Fin, LANE), jnp.float32)
    a_proj = a_proj.at[:, 0].set(a_src).at[:, 1].set(a_dst)

    # Per-call-site VMEM accounting for Kernel B (the dominant one):
    # double-buffered bias / attention / f / output tiles, f32 temporaries,
    # plus the resident (double-buffered) Wh and f_dst row.
    wh_item = jnp.dtype(matmul_dtype).itemsize
    att_item = jnp.dtype(att_dtype).itemsize if emit_att else 0
    resident = 2 * Np * Fp * wh_item + 2 * Np * 4
    per_row = (2 * Np * 2                  # bias tile (bf16), double-buffered
               + 2 * Np * att_item         # attention output tile (layer 1 only)
               + 3 * Np * 4                # e / p f32 temporaries
               + 2 * LANE * 4              # f tile
               + 2 * Fp * jnp.dtype(out_dtype).itemsize)
    tm = _pick_row_tile(Np, resident_bytes=resident, per_row_bytes=per_row,
                        budget_bytes=int(vmem_limit * 0.75))

    wh, f = gat_project(x, W_pad.astype(x.dtype), a_proj.astype(x.dtype),
                        tm=tm, wh_dtype=matmul_dtype, vmem_limit=vmem_limit)
    f_dst_row = f[:, 1].reshape(1, Np)      # lane-dense row, built once

    return gat_attention(f, f_dst_row, bias, wh, alpha=alpha,
                         apply_elu=apply_elu, emit_att=emit_att, tm=tm,
                         matmul_dtype=matmul_dtype, out_dtype=out_dtype,
                         att_dtype=att_dtype, vmem_limit=vmem_limit)


# ----------------------------------------------------------------------------
# Full GAT forward (mirrors GAT.forward(w, h, x, adj) -> (x, b) in eval mode).
# ----------------------------------------------------------------------------
def gat_forward(params, w, h, x, adj, *, alpha=0.2, dropout=0.6,
                matmul_dtype=jnp.bfloat16, att_dtype=jnp.float32):
    # F.dropout(..., training=False) is identity in eval mode.
    # TODO(synk): GraphAttentionLayer source is not provided; the extra `w`/`h`
    # arguments are passed through unused and cc[1] is taken to be the layer's
    # attention matrix (softmax weights), matching the GAT wrapper's use of it.
    del w, h, dropout

    N = x.shape[0]
    nhid = params["W0"].shape[1]
    nclass = params["W_out"].shape[1]
    vmem_limit = _vmem_limit_bytes()

    # Pad N to a lane multiple once (padded rows/cols are fully masked) and
    # pre-bake the adjacency into an additive bf16 bias shared by both layers.
    Np = _round_up(N, LANE)
    x_pad = jnp.zeros((Np, x.shape[1]), x.dtype).at[:N, :].set(x)
    bias = jnp.full((Np, Np), _NEG_INF, jnp.float32)
    bias = bias.at[:N, :N].set(jnp.where(adj > 0, 0.0, _NEG_INF))
    bias = bias.astype(jnp.bfloat16)

    # attentions[0]: concat=True -> ELU inside the layer; attention kept.
    # Hidden activations stay lane-padded (padded columns exact zeros) and in
    # matmul_dtype, feeding layer 2 directly with a row-padded W_out.
    h1_pad, b_pad = gat_layer(x_pad, params["W0"], params["a0"], bias,
                              alpha=alpha, apply_elu=True, emit_att=True,
                              out_dtype=matmul_dtype, matmul_dtype=matmul_dtype,
                              att_dtype=att_dtype, vmem_limit=vmem_limit)
    # torch.cat([cc[0]], dim=1) of a single head is identity -> omitted.
    Fp1 = h1_pad.shape[1]
    W_out_rows = jnp.zeros((Fp1, nclass), jnp.float32).at[:nhid, :].set(params["W_out"])

    # out_att: concat=False (no in-layer ELU); GAT applies F.elu afterwards -> fused.
    # Its attention matrix is discarded by the module -> not emitted.
    out_pad, _ = gat_layer(h1_pad, W_out_rows, params["a_out"], bias,
                           alpha=alpha, apply_elu=True, emit_att=False,
                           out_dtype=jnp.float32, matmul_dtype=matmul_dtype,
                           att_dtype=att_dtype, vmem_limit=vmem_limit)
    return out_pad[:N, :nclass], b_pad[:N, :N]


# ----------------------------------------------------------------------------
# Pure-JAX reference (for correctness check) and parameter init
# ----------------------------------------------------------------------------
def gat_reference(params, x, adj, *, alpha=0.2):
    hi = jax.lax.Precision.HIGHEST

    def layer(xx, W, a):
        Wh = jnp.dot(xx, W, precision=hi)
        Fout = W.shape[1]
        e = jnp.dot(Wh, a[:Fout], precision=hi) + jnp.dot(Wh, a[Fout:], precision=hi).T
        e = jnp.where(e > 0, e, alpha * e)
        e = jnp.where(adj > 0, e, _NEG_INF)
        att = jax.nn.softmax(e, axis=1)
        return jax.nn.elu(jnp.dot(att, Wh, precision=hi)), att

    h1, b = layer(x, params["W0"], params["a0"])
    out, _ = layer(h1, params["W_out"], params["a_out"])
    return out, b


def xavier_uniform(key, shape, gain=1.414):
    fan_in, fan_out = shape[0], shape[1]
    bound = gain * jnp.sqrt(6.0 / (fan_in + fan_out))
    return jax.random.uniform(key, shape, jnp.float32, -bound, bound)


def init_gat_params(key, nfeat, nhid, nclass, nheads):
    k = jax.random.split(key, 4)
    return {
        "W0": xavier_uniform(k[0], (nfeat, nhid)),
        "a0": xavier_uniform(k[1], (2 * nhid, 1)),
        "W_out": xavier_uniform(k[2], (nhid * nheads, nclass)),
        "a_out": xavier_uniform(k[3], (2 * nclass, 1)),
    }


if __name__ == "__main__":
    N, nfeat, nhid, nclass, nheads = 128, 64, 32, 16, 1
    alpha, dropout = 0.2, 0.6

    key = jax.random.PRNGKey(0)
    k_par, k_x, k_adj, k_w, k_h = jax.random.split(key, 5)

    params = init_gat_params(k_par, nfeat, nhid, nclass, nheads)

    x = jax.random.normal(k_x, (N, nfeat), jnp.float32)
    # Random sparse-ish adjacency with self-loops (every softmax row is valid).
    adj = ((jax.random.uniform(k_adj, (N, N)) < 0.25) | jnp.eye(N, dtype=bool))
    adj = adj.astype(jnp.float32)
    # Dummy pass-through args matching the (w, h, x, adj) signature.
    w_arg = jax.random.normal(k_w, (nfeat, nhid), jnp.float32)
    h_arg = jax.random.normal(k_h, (N, nhid), jnp.float32)

    # Default mixed-precision (bf16 MXU / f32 accumulate) path.
    fwd = jax.jit(lambda p, w, h, xx, a: gat_forward(p, w, h, xx, a,
                                                     alpha=alpha, dropout=dropout))
    out, b = fwd(params, w_arg, h_arg, x, adj)
    jax.block_until_ready((out, b))
    assert out.shape == (N, nclass), out.shape
    assert b.shape == (N, N), b.shape
    assert bool(jnp.all(jnp.isfinite(out))) and bool(jnp.all(jnp.isfinite(b)))

    # Full-f32 path checked against the pure-JAX reference.
    fwd_f32 = jax.jit(lambda p, w, h, xx, a: gat_forward(
        p, w, h, xx, a, alpha=alpha, dropout=dropout, matmul_dtype=jnp.float32))
    out32, b32 = fwd_f32(params, w_arg, h_arg, x, adj)
    ref_out, ref_b = jax.jit(functools.partial(gat_reference, alpha=alpha))(params, x, adj)
    jax.block_until_ready((out32, b32, ref_out, ref_b))
    assert float(jnp.max(jnp.abs(out32 - ref_out))) < 1e-1
    assert float(jnp.max(jnp.abs(b32 - ref_b))) < 1e-1

    print("KERNEL_OK")
</pallas_src>

<mosaic_0001>
module attributes {stable_mosaic.version = 11 : i64} {
  func.func @_attention_kernel(%arg0: i32, %arg1: memref<128x128xf32, #tpu.memory_space<vmem>>, %arg2: memref<1x128xf32, #tpu.memory_space<vmem>>, %arg3: memref<128x128xbf16, #tpu.memory_space<vmem>>, %arg4: memref<128x128xbf16, #tpu.memory_space<vmem>>, %arg5: memref<128x128xbf16, #tpu.memory_space<vmem>>, %arg6: memref<128x128xf32, #tpu.memory_space<vmem>>) attributes {dimension_semantics = [#tpu.dimension_semantics<parallel>], iteration_bounds = array<i64: 1>, scalar_prefetch = 0 : i64, scratch_operands = 0 : i64, tpu.core_type = #tpu.core_type<tc>, window_params = [{transform_indices = @transform_0, window_bounds = array<i64: 128, 128>}, {pipeline_mode = #tpu.pipeline_mode<synchronous>, transform_indices = @transform_1, window_bounds = array<i64: 1, 128>}, {transform_indices = @transform_2, window_bounds = array<i64: 128, 128>}, {pipeline_mode = #tpu.pipeline_mode<synchronous>, transform_indices = @transform_3, window_bounds = array<i64: 128, 128>}, {transform_indices = @transform_4, window_bounds = array<i64: 128, 128>}, {transform_indices = @transform_5, window_bounds = array<i64: 128, 128>}]} {
    %c0 = arith.constant 0 : index
    %c0_0 = arith.constant 0 : index
    %0 = vector.load %arg1[%c0, %c0_0] : memref<128x128xf32, #tpu.memory_space<vmem>>, vector<128x1xf32>
    %c0_1 = arith.constant 0 : index
    %c0_2 = arith.constant 0 : index
    %1 = vector.load %arg2[%c0_1, %c0_2] : memref<1x128xf32, #tpu.memory_space<vmem>>, vector<1x128xf32>
    %2 = vector.broadcast %0 : vector<128x1xf32> to vector<128x128xf32>
    %3 = vector.broadcast %1 : vector<1x128xf32> to vector<128x128xf32>
    %4 = arith.addf %2, %3 : vector<128x128xf32>
    %cst = arith.constant 0.000000e+00 : f32
    %5 = vector.broadcast %cst : f32 to vector<128x128xf32>
    %6 = arith.cmpf ogt, %4, %5 : vector<128x128xf32>
    %cst_3 = arith.constant 2.000000e-01 : f32
    %7 = vector.broadcast %cst_3 : f32 to vector<128x128xf32>
    %8 = arith.mulf %7, %4 : vector<128x128xf32>
    %9 = arith.select %6, %4, %8 : vector<128x128xi1>, vector<128x128xf32>
    %c0_4 = arith.constant 0 : index
    %c0_5 = arith.constant 0 : index
    %10 = vector.load %arg3[%c0_4, %c0_5] : memref<128x128xbf16, #tpu.memory_space<vmem>>, vector<128x128xbf16>
    %11 = arith.extf %10 : vector<128x128xbf16> to vector<128x128xf32>
    %12 = arith.addf %9, %11 : vector<128x128xf32>
    %cst_6 = arith.constant dense<0xFF800000> : vector<128xf32>
    %13 = vector.multi_reduction <maximumf>, %12, %cst_6 [1] : vector<128x128xf32> to vector<128xf32>
    %14 = vector.shape_cast %13 : vector<128xf32> to vector<128x1xf32>
    %15 = vector.broadcast %14 : vector<128x1xf32> to vector<128x128xf32>
    %16 = arith.subf %12, %15 : vector<128x128xf32>
    %17 = math.exp %16 : vector<128x128xf32>
    %cst_7 = arith.constant dense<0.000000e+00> : vector<128xf32>
    %18 = vector.multi_reduction <add>, %17, %cst_7 [1] : vector<128x128xf32> to vector<128xf32>
    %19 = vector.shape_cast %18 : vector<128xf32> to vector<128x1xf32>
    %cst_8 = arith.constant 1.000000e+00 : f32
    %20 = vector.broadcast %cst_8 : f32 to vector<128x1xf32>
    %21 = arith.divf %20, %19 : vector<128x1xf32>
    %22 = vector.broadcast %21 : vector<128x1xf32> to vector<128x128xf32>
    %23 = arith.mulf %17, %22 : vector<128x128xf32>
    %c0_9 = arith.constant 0 : index
    %c0_10 = arith.constant 0 : index
    %24 = vector.load %arg6[%c0_9, %c0_10] : memref<128x128xf32, #tpu.memory_space<vmem>>, vector<128x128xf32>
    tpu.vector_store %arg6[%c0_9, %c0_10], %23 {strides = array<i32>} : memref<128x128xf32, #tpu.memory_space<vmem>>, vector<128x128xf32>,
    %25 = arith.truncf %23 : vector<128x128xf32> to vector<128x128xbf16>
    %c0_11 = arith.constant 0 : index
    %c0_12 = arith.constant 0 : index
    %26 = vector.load %arg4[%c0_11, %c0_12] : memref<128x128xbf16, #tpu.memory_space<vmem>>, vector<128x128xbf16>
    %cst_13 = arith.constant dense<0.000000e+00> : vector<128x128xf32>
    %27 = tpu.matmul %25, %26, %cst_13 {dimension_numbers = #tpu.dot_dimension_numbers<[1], [0], [0], [1], [0, 0, 1, 1], [], []>} : vector<128x128xbf16>, vector<128x128xbf16>, vector<128x128xf32> -> vector<128x128xf32>
    %cst_14 = arith.constant 0.000000e+00 : f32
    %28 = vector.broadcast %cst_14 : f32 to vector<128x128xf32>
    %29 = arith.cmpf ogt, %27, %28 : vector<128x128xf32>
    %cst_15 = arith.constant 0.000000e+00 : f32
    %30 = vector.broadcast %cst_15 : f32 to vector<128x128xf32>
    %31 = arith.minimumf %27, %30 : vector<128x128xf32>
    %32 = math.exp %31 : vector<128x128xf32>
    %cst_16 = arith.constant 1.000000e+00 : f32
    %33 = vector.broadcast %cst_16 : f32 to vector<128x128xf32>
    %34 = arith.subf %32, %33 : vector<128x128xf32>
    %35 = arith.select %29, %27, %34 : vector<128x128xi1>, vector<128x128xf32>
    %36 = arith.truncf %35 : vector<128x128xf32> to vector<128x128xbf16>
    %c0_17 = arith.constant 0 : index
    %c0_18 = arith.constant 0 : index
    %37 = vector.load %arg5[%c0_17, %c0_18] : memref<128x128xbf16, #tpu.memory_space<vmem>>, vector<128x128xbf16>
    tpu.vector_store %arg5[%c0_17, %c0_18], %36 {strides = array<i32>} : memref<128x128xbf16, #tpu.memory_space<vmem>>, vector<128x128xbf16>,
    return
  }
  func.func @transform_0(%arg0: i32) -> (i32, i32) {
    %c0_i32 = arith.constant 0 : i32
    %c0_i32_0 = arith.constant 0 : i32
    return %arg0, %c0_i32 : i32, i32
  }
  func.func @transform_1(%arg0: i32) -> (i32, i32) {
    %c0_i32 = arith.constant 0 : i32
    %c0_i32_0 = arith.constant 0 : i32
    %c0_i32_1 = arith.constant 0 : i32
    return %c0_i32, %c0_i32_0 : i32, i32
  }
  func.func @transform_2(%arg0: i32) -> (i32, i32) {
    %c0_i32 = arith.constant 0 : i32
    %c0_i32_0 = arith.constant 0 : i32
    return %arg0, %c0_i32 : i32, i32
  }
  func.func @transform_3(%arg0: i32) -> (i32, i32) {
    %c0_i32 = arith.constant 0 : i32
    %c0_i32_0 = arith.constant 0 : i32
    %c0_i32_1 = arith.constant 0 : i32
    return %c0_i32, %c0_i32_0 : i32, i32
  }
  func.func @transform_4(%arg0: i32) -> (i32, i32) {
    %c0_i32 = arith.constant 0 : i32
    %c0_i32_0 = arith.constant 0 : i32
    return %arg0, %c0_i32 : i32, i32
  }
  func.func @transform_5(%arg0: i32) -> (i32, i32) {
    %c0_i32 = arith.constant 0 : i32
    %c0_i32_0 = arith.constant 0 : i32
    return %arg0, %c0_i32 : i32, i32
  }
}

module attributes {stable_mosaic.version = 11 : i64} {
  func.func @_project_kernel(%arg0: i32, %arg1: memref<128x64xf32, #tpu.memory_space<vmem>>, %arg2: memref<64x128xf32, #tpu.memory_space<vmem>>, %arg3: memref<64x128xf32, #tpu.memory_space<vmem>>, %arg4: memref<128x128xbf16, #tpu.memory_space<vmem>>, %arg5: memref<128x128xf32, #tpu.memory_space<vmem>>) attributes {dimension_semantics = [#tpu.dimension_semantics<parallel>], iteration_bounds = array<i64: 1>, scalar_prefetch = 0 : i64, scratch_operands = 0 : i64, tpu.core_type = #tpu.core_type<tc>, window_params = [{transform_indices = @transform_0, window_bounds = array<i64: 128, 64>}, {pipeline_mode = #tpu.pipeline_mode<synchronous>, transform_indices = @transform_1, window_bounds = array<i64: 64, 128>}, {pipeline_mode = #tpu.pipeline_mode<synchronous>, transform_indices = @transform_2, window_bounds = array<i64: 64, 128>}, {transform_indices = @transform_3, window_bounds = array<i64: 128, 128>}, {transform_indices = @transform_4, window_bounds = array<i64: 128, 128>}]} {
    %c0 = arith.constant 0 : index
    %c0_0 = arith.constant 0 : index
    %0 = vector.load %arg1[%c0, %c0_0] : memref<128x64xf32, #tpu.memory_space<vmem>>, vector<128x64xf32>
    %c0_1 = arith.constant 0 : index
    %c0_2 = arith.constant 0 : index
    %1 = vector.load %arg2[%c0_1, %c0_2] : memref<64x128xf32, #tpu.memory_space<vmem>>, vector<64x128xf32>
    %cst = arith.constant dense<0.000000e+00> : vector<128x128xf32>
    %2 = tpu.matmul %0, %1, %cst {dimension_numbers = #tpu.dot_dimension_numbers<[1], [0], [0], [1], [0, 0, 1, 1], [], []>} : vector<128x64xf32>, vector<64x128xf32>, vector<128x128xf32> -> vector<128x128xf32>
    %3 = arith.truncf %2 : vector<128x128xf32> to vector<128x128xbf16>
    %c0_3 = arith.constant 0 : index
    %c0_4 = arith.constant 0 : index
    %4 = vector.load %arg4[%c0_3, %c0_4] : memref<128x128xbf16, #tpu.memory_space<vmem>>, vector<128x128xbf16>
    tpu.vector_store %arg4[%c0_3, %c0_4], %3 {strides = array<i32>} : memref<128x128xbf16, #tpu.memory_space<vmem>>, vector<128x128xbf16>,
    %c0_5 = arith.constant 0 : index
    %c0_6 = arith.constant 0 : index
    %5 = vector.load %arg3[%c0_5, %c0_6] : memref<64x128xf32, #tpu.memory_space<vmem>>, vector<64x128xf32>
    %cst_7 = arith.constant dense<0.000000e+00> : vector<128x128xf32>
    %6 = tpu.matmul %0, %5, %cst_7 {dimension_numbers = #tpu.dot_dimension_numbers<[1], [0], [0], [1], [0, 0, 1, 1], [], []>} : vector<128x64xf32>, vector<64x128xf32>, vector<128x128xf32> -> vector<128x128xf32>
    %c0_8 = arith.constant 0 : index
    %c0_9 = arith.constant 0 : index
    %7 = vector.load %arg5[%c0_8, %c0_9] : memref<128x128xf32, #tpu.memory_space<vmem>>, vector<128x128xf32>
    tpu.vector_store %arg5[%c0_8, %c0_9], %6 {strides = array<i32>} : memref<128x128xf32, #tpu.memory_space<vmem>>, vector<128x128xf32>,
    return
  }
  func.func @transform_0(%arg0: i32) -> (i32, i32) {
    %c0_i32 = arith.constant 0 : i32
    %c0_i32_0 = arith.constant 0 : i32
    return %arg0, %c0_i32 : i32, i32
  }
  func.func @transform_1(%arg0: i32) -> (i32, i32) {
    %c0_i32 = arith.constant 0 : i32
    %c0_i32_0 = arith.constant 0 : i32
    %c0_i32_1 = arith.constant 0 : i32
    return %c0_i32, %c0_i32_0 : i32, i32
  }
  func.func @transform_2(%arg0: i32) -> (i32, i32) {
    %c0_i32 = arith.constant 0 : i32
    %c0_i32_0 = arith.constant 0 : i32
    %c0_i32_1 = arith.constant 0 : i32
    return %c0_i32, %c0_i32_0 : i32, i32
  }
  func.func @transform_3(%arg0: i32) -> (i32, i32) {
    %c0_i32 = arith.constant 0 : i32
    %c0_i32_0 = arith.constant 0 : i32
    return %arg0, %c0_i32 : i32, i32
  }
  func.func @transform_4(%arg0: i32) -> (i32, i32) {
    %c0_i32 = arith.constant 0 : i32
    %c0_i32_0 = arith.constant 0 : i32
    return %arg0, %c0_i32 : i32, i32
  }
}

module attributes {stable_mosaic.version = 11 : i64} {
  func.func @_project_kernel(%arg0: i32, %arg1: memref<128x128xbf16, #tpu.memory_space<vmem>>, %arg2: memref<128x128xbf16, #tpu.memory_space<vmem>>, %arg3: memref<128x128xbf16, #tpu.memory_space<vmem>>, %arg4: memref<128x128xbf16, #tpu.memory_space<vmem>>, %arg5: memref<128x128xf32, #tpu.memory_space<vmem>>) attributes {dimension_semantics = [#tpu.dimension_semantics<parallel>], iteration_bounds = array<i64: 1>, scalar_prefetch = 0 : i64, scratch_operands = 0 : i64, tpu.core_type = #tpu.core_type<tc>, window_params = [{transform_indices = @transform_0, window_bounds = array<i64: 128, 128>}, {pipeline_mode = #tpu.pipeline_mode<synchronous>, transform_indices = @transform_1, window_bounds = array<i64: 128, 128>}, {pipeline_mode = #tpu.pipeline_mode<synchronous>, transform_indices = @transform_2, window_bounds = array<i64: 128, 128>}, {transform_indices = @transform_3, window_bounds = array<i64: 128, 128>}, {transform_indices = @transform_4, window_bounds = array<i64: 128, 128>}]} {
    %c0 = arith.constant 0 : index
    %c0_0 = arith.constant 0 : index
    %0 = vector.load %arg1[%c0, %c0_0] : memref<128x128xbf16, #tpu.memory_space<vmem>>, vector<128x128xbf16>
    %c0_1 = arith.constant 0 : index
    %c0_2 = arith.constant 0 : index
    %1 = vector.load %arg2[%c0_1, %c0_2] : memref<128x128xbf16, #tpu.memory_space<vmem>>, vector<128x128xbf16>
    %cst = arith.constant dense<0.000000e+00> : vector<128x128xf32>
    %2 = tpu.matmul %0, %1, %cst {dimension_numbers = #tpu.dot_dimension_numbers<[1], [0], [0], [1], [0, 0, 1, 1], [], []>} : vector<128x128xbf16>, vector<128x128xbf16>, vector<128x128xf32> -> vector<128x128xf32>
    %3 = arith.truncf %2 : vector<128x128xf32> to vector<128x128xbf16>
    %c0_3 = arith.constant 0 : index
    %c0_4 = arith.constant 0 : index
    %4 = vector.load %arg4[%c0_3, %c0_4] : memref<128x128xbf16, #tpu.memory_space<vmem>>, vector<128x128xbf16>
    tpu.vector_store %arg4[%c0_3, %c0_4], %3 {strides = array<i32>} : memref<128x128xbf16, #tpu.memory_space<vmem>>, vector<128x128xbf16>,
    %c0_5 = arith.constant 0 : index
    %c0_6 = arith.constant 0 : index
    %5 = vector.load %arg3[%c0_5, %c0_6] : memref<128x128xbf16, #tpu.memory_space<vmem>>, vector<128x128xbf16>
    %cst_7 = arith.constant dense<0.000000e+00> : vector<128x128xf32>
    %6 = tpu.matmul %0, %5, %cst_7 {dimension_numbers = #tpu.dot_dimension_numbers<[1], [0], [0], [1], [0, 0, 1, 1], [], []>} : vector<128x128xbf16>, vector<128x128xbf16>, vector<128x128xf32> -> vector<128x128xf32>
    %c0_8 = arith.constant 0 : index
    %c0_9 = arith.constant 0 : index
    %7 = vector.load %arg5[%c0_8, %c0_9] : memref<128x128xf32, #tpu.memory_space<vmem>>, vector<128x128xf32>
    tpu.vector_store %arg5[%c0_8, %c0_9], %6 {strides = array<i32>} : memref<128x128xf32, #tpu.memory_space<vmem>>, vector<128x128xf32>,
    return
  }
  func.func @transform_0(%arg0: i32) -> (i32, i32) {
    %c0_i32 = arith.constant 0 : i32
    %c0_i32_0 = arith.constant 0 : i32
    return %arg0, %c0_i32 : i32, i32
  }
  func.func @transform_1(%arg0: i32) -> (i32, i32) {
    %c0_i32 = arith.constant 0 : i32
    %c0_i32_0 = arith.constant 0 : i32
    %c0_i32_1 = arith.constant 0 : i32
    return %c0_i32, %c0_i32_0 : i32, i32
  }
  func.func @transform_2(%arg0: i32) -> (i32, i32) {
    %c0_i32 = arith.constant 0 : i32
    %c0_i32_0 = arith.constant 0 : i32
    %c0_i32_1 = arith.constant 0 : i32
    return %c0_i32, %c0_i32_0 : i32, i32
  }
  func.func @transform_3(%arg0: i32) -> (i32, i32) {
    %c0_i32 = arith.constant 0 : i32
    %c0_i32_0 = arith.constant 0 : i32
    return %arg0, %c0_i32 : i32, i32
  }
  func.func @transform_4(%arg0: i32) -> (i32, i32) {
    %c0_i32 = arith.constant 0 : i32
    %c0_i32_0 = arith.constant 0 : i32
    return %arg0, %c0_i32 : i32, i32
  }
}

module attributes {stable_mosaic.version = 11 : i64} {
  func.func @_attention_kernel(%arg0: i32, %arg1: memref<128x128xf32, #tpu.memory_space<vmem>>, %arg2: memref<1x128xf32, #tpu.memory_space<vmem>>, %arg3: memref<128x128xbf16, #tpu.memory_space<vmem>>, %arg4: memref<128x128xbf16, #tpu.memory_space<vmem>>, %arg5: memref<128x128xf32, #tpu.memory_space<vmem>>) attributes {dimension_semantics = [#tpu.dimension_semantics<parallel>], iteration_bounds = array<i64: 1>, scalar_prefetch = 0 : i64, scratch_operands = 0 : i64, tpu.core_type = #tpu.core_type<tc>, window_params = [{transform_indices = @transform_0, window_bounds = array<i64: 128, 128>}, {pipeline_mode = #tpu.pipeline_mode<synchronous>, transform_indices = @transform_1, window_bounds = array<i64: 1, 128>}, {transform_indices = @transform_2, window_bounds = array<i64: 128, 128>}, {pipeline_mode = #tpu.pipeline_mode<synchronous>, transform_indices = @transform_3, window_bounds = array<i64: 128, 128>}, {transform_indices = @transform_4, window_bounds = array<i64: 128, 128>}]} {
    %c0 = arith.constant 0 : index
    %c0_0 = arith.constant 0 : index
    %0 = vector.load %arg1[%c0, %c0_0] : memref<128x128xf32, #tpu.memory_space<vmem>>, vector<128x1xf32>
    %c0_1 = arith.constant 0 : index
    %c0_2 = arith.constant 0 : index
    %1 = vector.load %arg2[%c0_1, %c0_2] : memref<1x128xf32, #tpu.memory_space<vmem>>, vector<1x128xf32>
    %2 = vector.broadcast %0 : vector<128x1xf32> to vector<128x128xf32>
    %3 = vector.broadcast %1 : vector<1x128xf32> to vector<128x128xf32>
    %4 = arith.addf %2, %3 : vector<128x128xf32>
    %cst = arith.constant 0.000000e+00 : f32
    %5 = vector.broadcast %cst : f32 to vector<128x128xf32>
    %6 = arith.cmpf ogt, %4, %5 : vector<128x128xf32>
    %cst_3 = arith.constant 2.000000e-01 : f32
    %7 = vector.broadcast %cst_3 : f32 to vector<128x128xf32>
    %8 = arith.mulf %7, %4 : vector<128x128xf32>
    %9 = arith.select %6, %4, %8 : vector<128x128xi1>, vector<128x128xf32>
    %c0_4 = arith.constant 0 : index
    %c0_5 = arith.constant 0 : index
    %10 = vector.load %arg3[%c0_4, %c0_5] : memref<128x128xbf16, #tpu.memory_space<vmem>>, vector<128x128xbf16>
    %11 = arith.extf %10 : vector<128x128xbf16> to vector<128x128xf32>
    %12 = arith.addf %9, %11 : vector<128x128xf32>
    %cst_6 = arith.constant dense<0xFF800000> : vector<128xf32>
    %13 = vector.multi_reduction <maximumf>, %12, %cst_6 [1] : vector<128x128xf32> to vector<128xf32>
    %14 = vector.shape_cast %13 : vector<128xf32> to vector<128x1xf32>
    %15 = vector.broadcast %14 : vector<128x1xf32> to vector<128x128xf32>
    %16 = arith.subf %12, %15 : vector<128x128xf32>
    %17 = math.exp %16 : vector<128x128xf32>
    %cst_7 = arith.constant dense<0.000000e+00> : vector<128xf32>
    %18 = vector.multi_reduction <add>, %17, %cst_7 [1] : vector<128x128xf32> to vector<128xf32>
    %19 = vector.shape_cast %18 : vector<128xf32> to vector<128x1xf32>
    %cst_8 = arith.constant 1.000000e+00 : f32
    %20 = vector.broadcast %cst_8 : f32 to vector<128x1xf32>
    %21 = arith.divf %20, %19 : vector<128x1xf32>
    %22 = arith.truncf %17 : vector<128x128xf32> to vector<128x128xbf16>
    %c0_9 = arith.constant 0 : index
    %c0_10 = arith.constant 0 : index
    %23 = vector.load %arg4[%c0_9, %c0_10] : memref<128x128xbf16, #tpu.memory_space<vmem>>, vector<128x128xbf16>
    %cst_11 = arith.constant dense<0.000000e+00> : vector<128x128xf32>
    %24 = tpu.matmul %22, %23, %cst_11 {dimension_numbers = #tpu.dot_dimension_numbers<[1], [0], [0], [1], [0, 0, 1, 1], [], []>} : vector<128x128xbf16>, vector<128x128xbf16>, vector<128x128xf32> -> vector<128x128xf32>
    %25 = vector.broadcast %21 : vector<128x1xf32> to vector<128x128xf32>
    %26 = arith.mulf %24, %25 : vector<128x128xf32>
    %cst_12 = arith.constant 0.000000e+00 : f32
    %27 = vector.broadcast %cst_12 : f32 to vector<128x128xf32>
    %28 = arith.cmpf ogt, %26, %27 : vector<128x128xf32>
    %cst_13 = arith.constant 0.000000e+00 : f32
    %29 = vector.broadcast %cst_13 : f32 to vector<128x128xf32>
    %30 = arith.minimumf %26, %29 : vector<128x128xf32>
    %31 = math.exp %30 : vector<128x128xf32>
    %cst_14 = arith.constant 1.000000e+00 : f32
    %32 = vector.broadcast %cst_14 : f32 to vector<128x128xf32>
    %33 = arith.subf %31, %32 : vector<128x128xf32>
    %34 = arith.select %28, %26, %33 : vector<128x128xi1>, vector<128x128xf32>
    %c0_15 = arith.constant 0 : index
    %c0_16 = arith.constant 0 : index
    %35 = vector.load %arg5[%c0_15, %c0_16] : memref<128x128xf32, #tpu.memory_space<vmem>>, vector<128x128xf32>
    tpu.vector_store %arg5[%c0_15, %c0_16], %34 {strides = array<i32>} : memref<128x128xf32, #tpu.memory_space<vmem>>, vector<128x128xf32>,
    return
  }
  func.func @transform_0(%arg0: i32) -> (i32, i32) {
    %c0_i32 = arith.constant 0 : i32
    %c0_i32_0 = arith.constant 0 : i32
    return %arg0, %c0_i32 : i32, i32
  }
  func.func @transform_1(%arg0: i32) -> (i32, i32) {
    %c0_i32 = arith.constant 0 : i32
    %c0_i32_0 = arith.constant 0 : i32
    %c0_i32_1 = arith.constant 0 : i32
    return %c0_i32, %c0_i32_0 : i32, i32
  }
  func.func @transform_2(%arg0: i32) -> (i32, i32) {
    %c0_i32 = arith.constant 0 : i32
    %c0_i32_0 = arith.constant 0 : i32
    return %arg0, %c0_i32 : i32, i32
  }
  func.func @transform_3(%arg0: i32) -> (i32, i32) {
    %c0_i32 = arith.constant 0 : i32
    %c0_i32_0 = arith.constant 0 : i32
    %c0_i32_1 = arith.constant 0 : i32
    return %c0_i32, %c0_i32_0 : i32, i32
  }
  func.func @transform_4(%arg0: i32) -> (i32, i32) {
    %c0_i32 = arith.constant 0 : i32
    %c0_i32_0 = arith.constant 0 : i32
    return %arg0, %c0_i32 : i32, i32
  }
}

</mosaic_0001>

<llo_original>
// kernel: _lambda_.4
$region0: #{_lambda_.4}
  #allocation0 [shape = 'u32[]', space=smem, size = 0x4, offset = 0x4, fixed_abs, tag = 'smem constant byte address 0x4 - core index']
  #allocation1 [shape = 'u32[72,128]{1,0:T(1,128)}', space=vmem, size = 0x9000, scoped, tag = 'internal scratch']
  %s0 = inlined_call_operand.vmem [shape: f32[128,64], index: 0, kind: input, shape index: {}]
  %s1 = inlined_call_operand.vmem [shape: f32[64,128], index: 1, kind: input, shape index: {}]
  %s2 = inlined_call_operand.vmem [shape: f32[64,128], index: 2, kind: input, shape index: {}]
  %s3 = inlined_call_operand.vmem [shape: bf16[128,128], index: 3, kind: output, shape index: {0}]
  %s4 = inlined_call_operand.vmem [shape: f32[128,128], index: 4, kind: output, shape index: {1}]
  %5 = xla_tuple %s3, %s4
  %s6 = sld [smem:[#allocation0]]
  $region30: #{_lambda_.4} parent=0
    _
  %s8 = ssub.s32 1, %s6
  %s9 = scalar_select 0, %s8, %s6
  // Predicated region
  $region2: #{_lambda_.4} parent=0 // pred_check
    _
  $region3: #{_lambda_.4} parent=0 // pred_check_branch
    %11 = sbr.rel (0) target = $region5
  $region4: #{_lambda_.4} parent=0 // pred_region
    _
  $region5: #{_lambda_.4} parent=0 // pred_fallthru
    _
  // Predicated region
  $region6: #{_lambda_.4} parent=0 // pred_check
    _
  $region7: #{_lambda_.4} parent=0 // pred_check_branch
    %13 = sbr.rel (0) target = $region9
  $region8: #{_lambda_.4} parent=0 // pred_region
    _
  $region9: #{_lambda_.4} parent=0 // pred_fallthru
    _
  // Predicated region
  $region10: #{_lambda_.4} parent=0 // pred_check
    _
  $region11: #{_lambda_.4} parent=0 // pred_check_branch
    %15 = sbr.rel (0) target = $region13
  $region12: #{_lambda_.4} parent=0 // pred_region
    _
  $region13: #{_lambda_.4} parent=0 // pred_fallthru
    _
  %v16 = vld [vmem:[%s0] sm:$0xff]
  %v17 = vld [vmem:[%s0 + $0x8] sm:$0xff]
  %v18 = vld [vmem:[%s0 + $0x10] sm:$0xff]
  %v19 = vld [vmem:[%s0 + $0x18] sm:$0xff]
  %v20 = vld [vmem:[%s0 + $0x20] sm:$0xff]
  %v21 = vld [vmem:[%s0 + $0x28] sm:$0xff]
  %v22 = vld [vmem:[%s0 + $0x30] sm:$0xff]
  %v23 = vld [vmem:[%s0 + $0x38] sm:$0xff]
  %v24 = vld [vmem:[%s0 + $0x40] sm:$0xff]
  %v25 = vld [vmem:[%s0 + $0x48] sm:$0xff]
  %v26 = vld [vmem:[%s0 + $0x50] sm:$0xff]
  %v27 = vld [vmem:[%s0 + $0x58] sm:$0xff]
  %v28 = vld [vmem:[%s0 + $0x60] sm:$0xff]
  %v29 = vld [vmem:[%s0 + $0x68] sm:$0xff]
  %v30 = vld [vmem:[%s0 + $0x70] sm:$0xff]
  %v31 = vld [vmem:[%s0 + $0x78] sm:$0xff]
  %v32 = vld [vmem:[%s1] sm:$0xff]
  %v33 = vld [vmem:[%s1 + $0x8] sm:$0xff]
  %v34 = vld [vmem:[%s1 + $0x10] sm:$0xff]
  %v35 = vld [vmem:[%s1 + $0x18] sm:$0xff]
  %v36 = vld [vmem:[%s1 + $0x20] sm:$0xff]
  %v37 = vld [vmem:[%s1 + $0x28] sm:$0xff]
  %v38 = vld [vmem:[%s1 + $0x30] sm:$0xff]
  %v39 = vld [vmem:[%s1 + $0x38] sm:$0xff]
  %vm40 = vcmask 523264
  %v42 = vsel %vm40, %v16, 0
  %v45 = vsel %vm40, %v17, 0
  %v48 = vsel %vm40, %v18, 0
  %v51 = vsel %vm40, %v19, 0
  %v54 = vsel %vm40, %v20, 0
  %v57 = vsel %vm40, %v21, 0
  %v60 = vsel %vm40, %v22, 0
  %v63 = vsel %vm40, %v23, 0
  %v66 = vsel %vm40, %v24, 0
  %v69 = vsel %vm40, %v25, 0
  %v72 = vsel %vm40, %v26, 0
  %v75 = vsel %vm40, %v27, 0
  %v78 = vsel %vm40, %v28, 0
  %v81 = vsel %vm40, %v29, 0
  %v84 = vsel %vm40, %v30, 0
  %v87 = vsel %vm40, %v31, 0
  %89 = vmatpush.msra.mxu0 0.0
  %90 = vmatpush.msra.mxu0 0.0
  %91 = vmatpush.msra.mxu0 0.0
  %92 = vmatpush.msra.mxu0 0.0
  %93 = vmatpush.msra.mxu0 0.0
  %94 = vmatpush.msra.mxu0 0.0
  %95 = vmatpush.msra.mxu0 0.0
  %96 = vmatpush.msra.mxu0 0.0
  %97 = vmatpush.msra.mxu0 %v39
  %98 = vmatpush.msra.mxu0 %v38
  %99 = vmatpush.msra.mxu0 %v37
  %100 = vmatpush.msra.mxu0 %v36
  %101 = vmatpush.msra.mxu0 %v35
  %102 = vmatpush.msra.mxu0 %v34
  %103 = vmatpush.msra.mxu0 %v33
  %104 = vmatpush.msra.mxu0 %v32
  %105 = vmatmul.f32.gmra.mxu0 %v42
  %v106 = vpop.f32.mrf.mxu0
  %v107 = vadd.f32 0.0, %v106
  %108 = vmatmul.f32.gmra.mxu0 %v45
  %v109 = vpop.f32.mrf.mxu0
  %v110 = vadd.f32 0.0, %v109
  %111 = vmatmul.f32.gmra.mxu0 %v48
  %v112 = vpop.f32.mrf.mxu0
  %v113 = vadd.f32 0.0, %v112
  %114 = vmatmul.f32.gmra.mxu0 %v51
  %v115 = vpop.f32.mrf.mxu0
  %v116 = vadd.f32 0.0, %v115
  %117 = vmatmul.f32.gmra.mxu0 %v54
  %v118 = vpop.f32.mrf.mxu0
  %v119 = vadd.f32 0.0, %v118
  %120 = vmatmul.f32.gmra.mxu0 %v57
  %v121 = vpop.f32.mrf.mxu0
  %v122 = vadd.f32 0.0, %v121
  %123 = vmatmul.f32.gmra.mxu0 %v60
  %v124 = vpop.f32.mrf.mxu0
  %v125 = vadd.f32 0.0, %v124
  %126 = vmatmul.f32.gmra.mxu0 %v63
  %v127 = vpop.f32.mrf.mxu0
  %v128 = vadd.f32 0.0, %v127
  %129 = vmatmul.f32.gmra.mxu0 %v66
  %v130 = vpop.f32.mrf.mxu0
  %v131 = vadd.f32 0.0, %v130
  %132 = vmatmul.f32.gmra.mxu0 %v69
  %v133 = vpop.f32.mrf.mxu0
  %v134 = vadd.f32 0.0, %v133
  %135 = vmatmul.f32.gmra.mxu0 %v72
  %v136 = vpop.f32.mrf.mxu0
  %v137 = vadd.f32 0.0, %v136
  %138 = vmatmul.f32.gmra.mxu0 %v75
  %v139 = vpop.f32.mrf.mxu0
  %v140 = vadd.f32 0.0, %v139
  %141 = vmatmul.f32.gmra.mxu0 %v78
  %v142 = vpop.f32.mrf.mxu0
  %v143 = vadd.f32 0.0, %v142
  %144 = vmatmul.f32.gmra.mxu0 %v81
  %v145 = vpop.f32.mrf.mxu0
  %v146 = vadd.f32 0.0, %v145
  %147 = vmatmul.f32.gmra.mxu0 %v84
  %v148 = vpop.f32.mrf.mxu0
  %v149 = vadd.f32 0.0, %v148
  %150 = vmatmul.f32.gmra.mxu0 %v87
  %v151 = vpop.f32.mrf.mxu0
  %v152 = vadd.f32 0.0, %v151
  %153 = vdwg.mxu0
  %v154 = vpack.c.bf16 %v107, %v107
  %v155 = vpack.c.bf16 %v110, %v110
  %v156 = vpack.c.bf16 %v113, %v113
  %v157 = vpack.c.bf16 %v116, %v116
  %v158 = vpack.c.bf16 %v119, %v119
  %v159 = vpack.c.bf16 %v122, %v122
  %v160 = vpack.c.bf16 %v125, %v125
  %v161 = vpack.c.bf16 %v128, %v128
  %v162 = vpack.c.bf16 %v131, %v131
  %v163 = vpack.c.bf16 %v134, %v134
  %v164 = vpack.c.bf16 %v137, %v137
  %v165 = vpack.c.bf16 %v140, %v140
  %v166 = vpack.c.bf16 %v143, %v143
  %v167 = vpack.c.bf16 %v146, %v146
  %v168 = vpack.c.bf16 %v149, %v149
  %v169 = vpack.c.bf16 %v152, %v152
  %170 = vst [vmem:[%s3] sm:$0xf] %v154
  %171 = vst [vmem:[%s3 + $0x4] sm:$0xf] %v155
  %172 = vst [vmem:[%s3 + $0x8] sm:$0xf] %v156
  %173 = vst [vmem:[%s3 + $0xc] sm:$0xf] %v157
  %174 = vst [vmem:[%s3 + $0x10] sm:$0xf] %v158
  %175 = vst [vmem:[%s3 + $0x14] sm:$0xf] %v159
  %176 = vst [vmem:[%s3 + $0x18] sm:$0xf] %v160
  %177 = vst [vmem:[%s3 + $0x1c] sm:$0xf] %v161
  %178 = vst [vmem:[%s3 + $0x20] sm:$0xf] %v162
  %179 = vst [vmem:[%s3 + $0x24] sm:$0xf] %v163
  %180 = vst [vmem:[%s3 + $0x28] sm:$0xf] %v164
  %181 = vst [vmem:[%s3 + $0x2c] sm:$0xf] %v165
  %182 = vst [vmem:[%s3 + $0x30] sm:$0xf] %v166
  %183 = vst [vmem:[%s3 + $0x34] sm:$0xf] %v167
  %184 = vst [vmem:[%s3 + $0x38] sm:$0xf] %v168
  %185 = vst [vmem:[%s3 + $0x3c] sm:$0xf] %v169
  %v186 = vld [vmem:[%s2] sm:$0xff]
  %v187 = vld [vmem:[%s2 + $0x8] sm:$0xff]
  %v188 = vld [vmem:[%s2 + $0x10] sm:$0xff]
  %v189 = vld [vmem:[%s2 + $0x18] sm:$0xff]
  %v190 = vld [vmem:[%s2 + $0x20] sm:$0xff]
  %v191 = vld [vmem:[%s2 + $0x28] sm:$0xff]
  %v192 = vld [vmem:[%s2 + $0x30] sm:$0xff]
  %v193 = vld [vmem:[%s2 + $0x38] sm:$0xff]
  %194 = vmatpush.msra.mxu0 0.0
  %195 = vmatpush.msra.mxu0 0.0
  %196 = vmatpush.msra.mxu0 0.0
  %197 = vmatpush.msra.mxu0 0.0
  %198 = vmatpush.msra.mxu0 0.0
  %199 = vmatpush.msra.mxu0 0.0
  %200 = vmatpush.msra.mxu0 0.0
  %201 = vmatpush.msra.mxu0 0.0
  %202 = vmatpush.msra.mxu0 %v193
  %203 = vmatpush.msra.mxu0 %v192
  %204 = vmatpush.msra.mxu0 %v191
  %205 = vmatpush.msra.mxu0 %v190
  %206 = vmatpush.msra.mxu0 %v189
  %207 = vmatpush.msra.mxu0 %v188
  %208 = vmatpush.msra.mxu0 %v187
  %209 = vmatpush.msra.mxu0 %v186
  %210 = vmatmul.f32.gmra.mxu0 %v42
  %v211 = vpop.f32.mrf.mxu0
  %v212 = vadd.f32 0.0, %v211
  %213 = vmatmul.f32.gmra.mxu0 %v45
  %v214 = vpop.f32.mrf.mxu0
  %v215 = vadd.f32 0.0, %v214
  %216 = vmatmul.f32.gmra.mxu0 %v48
  %v217 = vpop.f32.mrf.mxu0
  %v218 = vadd.f32 0.0, %v217
  %219 = vmatmul.f32.gmra.mxu0 %v51
  %v220 = vpop.f32.mrf.mxu0
  %v221 = vadd.f32 0.0, %v220
  %222 = vmatmul.f32.gmra.mxu0 %v54
  %v223 = vpop.f32.mrf.mxu0
  %v224 = vadd.f32 0.0, %v223
  %225 = vmatmul.f32.gmra.mxu0 %v57
  %v226 = vpop.f32.mrf.mxu0
  %v227 = vadd.f32 0.0, %v226
  %228 = vmatmul.f32.gmra.mxu0 %v60
  %v229 = vpop.f32.mrf.mxu0
  %v230 = vadd.f32 0.0, %v229
  %231 = vmatmul.f32.gmra.mxu0 %v63
  %v232 = vpop.f32.mrf.mxu0
  %v233 = vadd.f32 0.0, %v232
  %234 = vmatmul.f32.gmra.mxu0 %v66
  %v235 = vpop.f32.mrf.mxu0
  %v236 = vadd.f32 0.0, %v235
  %237 = vmatmul.f32.gmra.mxu0 %v69
  %v238 = vpop.f32.mrf.mxu0
  %v239 = vadd.f32 0.0, %v238
  %240 = vmatmul.f32.gmra.mxu0 %v72
  %v241 = vpop.f32.mrf.mxu0
  %v242 = vadd.f32 0.0, %v241
  %243 = vmatmul.f32.gmra.mxu0 %v75
  %v244 = vpop.f32.mrf.mxu0
  %v245 = vadd.f32 0.0, %v244
  %246 = vmatmul.f32.gmra.mxu0 %v78
  %v247 = vpop.f32.mrf.mxu0
  %v248 = vadd.f32 0.0, %v247
  %249 = vmatmul.f32.gmra.mxu0 %v81
  %v250 = vpop.f32.mrf.mxu0
  %v251 = vadd.f32 0.0, %v250
  %252 = vmatmul.f32.gmra.mxu0 %v84
  %v253 = vpop.f32.mrf.mxu0
  %v254 = vadd.f32 0.0, %v253
  %255 = vmatmul.f32.gmra.mxu0 %v87
  %v256 = vpop.f32.mrf.mxu0
  %v257 = vadd.f32 0.0, %v256
  %258 = vdwg.mxu0
  %259 = vst [vmem:[%s4] sm:$0xff] %v212
  %260 = vst [vmem:[%s4 + $0x8] sm:$0xff] %v215
  %261 = vst [vmem:[%s4 + $0x10] sm:$0xff] %v218
  %262 = vst [vmem:[%s4 + $0x18] sm:$0xff] %v221
  %263 = vst [vmem:[%s4 + $0x20] sm:$0xff] %v224
  %264 = vst [vmem:[%s4 + $0x28] sm:$0xff] %v227
  %265 = vst [vmem:[%s4 + $0x30] sm:$0xff] %v230
  %266 = vst [vmem:[%s4 + $0x38] sm:$0xff] %v233
  %267 = vst [vmem:[%s4 + $0x40] sm:$0xff] %v236
  %268 = vst [vmem:[%s4 + $0x48] sm:$0xff] %v239
  %269 = vst [vmem:[%s4 + $0x50] sm:$0xff] %v242
  %270 = vst [vmem:[%s4 + $0x58] sm:$0xff] %v245
  %271 = vst [vmem:[%s4 + $0x60] sm:$0xff] %v248
  %272 = vst [vmem:[%s4 + $0x68] sm:$0xff] %v251
  %273 = vst [vmem:[%s4 + $0x70] sm:$0xff] %v254
  %274 = vst [vmem:[%s4 + $0x78] sm:$0xff] %v257
  // Predicated region
  $region14: #{_lambda_.4} parent=0 // pred_check
    _
  $region15: #{_lambda_.4} parent=0 // pred_check_branch
    %276 = sbr.rel (0) target = $region17
  $region16: #{_lambda_.4} parent=0 // pred_region
    _
  $region17: #{_lambda_.4} parent=0 // pred_fallthru
    _
  // Predicated region
  $region18: #{_lambda_.4} parent=0 // pred_check
    _
  $region19: #{_lambda_.4} parent=0 // pred_check_branch
    %278 = sbr.rel (0) target = $region21
  $region20: #{_lambda_.4} parent=0 // pred_region
    _
  $region21: #{_lambda_.4} parent=0 // pred_fallthru
    _
  // Predicated region
  $region22: #{_lambda_.4} parent=0 // pred_check
    _
  $region23: #{_lambda_.4} parent=0 // pred_check_branch
    %280 = sbr.rel (0) target = $region25
  $region24: #{_lambda_.4} parent=0 // pred_region
    _
  $region25: #{_lambda_.4} parent=0 // pred_fallthru
    _
  // Predicated region
  $region26: #{_lambda_.4} parent=0 // pred_check
    _
  $region27: #{_lambda_.4} parent=0 // pred_check_branch
    %282 = sbr.rel (0) target = $region29
  $region28: #{_lambda_.4} parent=0 // pred_region
    _
  $region29: #{_lambda_.4} parent=0 // pred_fallthru
    _

// kernel: _lambda_.5
$region0: #{_lambda_.5}
  #allocation0 [shape = 'u32[]', space=smem, size = 0x4, offset = 0x4, fixed_abs, tag = 'smem constant byte address 0x4 - core index']
  #allocation1 [shape = 'u32[72,128]{1,0:T(1,128)}', space=vmem, size = 0x9000, scoped, tag = 'internal scratch']
  %s0 = inlined_call_operand.vmem [shape: f32[128,128], index: 0, kind: input, shape index: {}]
  %s1 = inlined_call_operand.vmem [shape: f32[1,128], index: 1, kind: input, shape index: {}]
  %s2 = inlined_call_operand.vmem [shape: bf16[128,128], index: 2, kind: input, shape index: {}]
  %s3 = inlined_call_operand.vmem [shape: bf16[128,128], index: 3, kind: input, shape index: {}]
  %s4 = inlined_call_operand.vmem [shape: bf16[128,128], index: 4, kind: output, shape index: {0}]
  %s5 = inlined_call_operand.hbm [shape: f32[128,128], index: 5, kind: output, shape index: {1}]
  %6 = xla_tuple %s4, %s5
  %s7 = sld [smem:[#allocation0]]
  $region34: #{_lambda_.5} parent=0
    _
  %s9 = ssub.s32 1, %s7
  %s10 = scalar_select 0, %s9, %s7
  $region1: #{_lambda_.5} parent=0
    #allocation2 [shape = 'u8[65536]{0}', space=vmem, size = 0x10000, scoped, tag = 'output window, operand 1, single buffered']
    #allocation3 [shape = 's32[1]{0}', space=sflag, size = 0x4, scoped, tag = 'scoped memory for _lambda_.5']
    %11 = vsyncpa [#allocation3], 0
    // Predicated region
    $region2: #{_lambda_.5} parent=1 // pred_check
      _
    $region3: #{_lambda_.5} parent=1 // pred_check_branch
      %13 = sbr.rel (0) target = $region5
    $region4: #{_lambda_.5} parent=1 // pred_region
      _
    $region5: #{_lambda_.5} parent=1 // pred_fallthru
      _
    // Predicated region
    $region6: #{_lambda_.5} parent=1 // pred_check
      _
    $region7: #{_lambda_.5} parent=1 // pred_check_branch
      %15 = sbr.rel (0) target = $region9
    $region8: #{_lambda_.5} parent=1 // pred_region
      _
    $region9: #{_lambda_.5} parent=1 // pred_fallthru
      _
    // Predicated region
    $region10: #{_lambda_.5} parent=1 // pred_check
      _
    $region11: #{_lambda_.5} parent=1 // pred_check_branch
      %17 = sbr.rel (0) target = $region13
    $region12: #{_lambda_.5} parent=1 // pred_region
      _
    $region13: #{_lambda_.5} parent=1 // pred_fallthru
      _
    // Predicated region
    $region14: #{_lambda_.5} parent=1 // pred_check
      _
    $region15: #{_lambda_.5} parent=1 // pred_check_branch
      %19 = sbr.rel (0) target = $region17
    $region16: #{_lambda_.5} parent=1 // pred_region
      _
    $region17: #{_lambda_.5} parent=1 // pred_fallthru
      _
    %v20 = vld [vmem:[%s0] sm:$0xff]
    %v21 = vld [vmem:[%s0 + $0x8] sm:$0xff]
    %v22 = vld [vmem:[%s0 + $0x10] sm:$0xff]
    %v23 = vld [vmem:[%s0 + $0x18] sm:$0xff]
    %v24 = vld [vmem:[%s0 + $0x20] sm:$0xff]
    %v25 = vld [vmem:[%s0 + $0x28] sm:$0xff]
    %v26 = vld [vmem:[%s0 + $0x30] sm:$0xff]
    %v27 = vld [vmem:[%s0 + $0x38] sm:$0xff]
    %v28 = vld [vmem:[%s0 + $0x40] sm:$0xff]
    %v29 = vld [vmem:[%s0 + $0x48] sm:$0xff]
    %v30 = vld [vmem:[%s0 + $0x50] sm:$0xff]
    %v31 = vld [vmem:[%s0 + $0x58] sm:$0xff]
    %v32 = vld [vmem:[%s0 + $0x60] sm:$0xff]
    %v33 = vld [vmem:[%s0 + $0x68] sm:$0xff]
    %v34 = vld [vmem:[%s0 + $0x70] sm:$0xff]
    %v35 = vld [vmem:[%s0 + $0x78] sm:$0xff]
    %v36 = vld [vmem:[%s1] sm:$0x1]
    %38 = vset.pattern.permute.xlu0 0
    %39 = vperm.xlu0 %38, %v20
    %v40 = vpop.permute.xlu0 %39
    %43 = vset.pattern.permute.xlu0 0
    %44 = vperm.xlu0 %43, %v21
    %v45 = vpop.permute.xlu0 %44
    %48 = vset.pattern.permute.xlu0 0
    %49 = vperm.xlu0 %48, %v22
    %v50 = vpop.permute.xlu0 %49
    %53 = vset.pattern.permute.xlu0 0
    %54 = vperm.xlu0 %53, %v23
    %v55 = vpop.permute.xlu0 %54
    %58 = vset.pattern.permute.xlu0 0
    %59 = vperm.xlu0 %58, %v24
    %v60 = vpop.permute.xlu0 %59
    %63 = vset.pattern.permute.xlu0 0
    %64 = vperm.xlu0 %63, %v25
    %v65 = vpop.permute.xlu0 %64
    %68 = vset.pattern.permute.xlu0 0
    %69 = vperm.xlu0 %68, %v26
    %v70 = vpop.permute.xlu0 %69
    %73 = vset.pattern.permute.xlu0 0
    %74 = vperm.xlu0 %73, %v27
    %v75 = vpop.permute.xlu0 %74
    %78 = vset.pattern.permute.xlu0 0
    %79 = vperm.xlu0 %78, %v28
    %v80 = vpop.permute.xlu0 %79
    %83 = vset.pattern.permute.xlu0 0
    %84 = vperm.xlu0 %83, %v29
    %v85 = vpop.permute.xlu0 %84
    %88 = vset.pattern.permute.xlu0 0
    %89 = vperm.xlu0 %88, %v30
    %v90 = vpop.permute.xlu0 %89
    %93 = vset.pattern.permute.xlu0 0
    %94 = vperm.xlu0 %93, %v31
    %v95 = vpop.permute.xlu0 %94
    %98 = vset.pattern.permute.xlu0 0
    %99 = vperm.xlu0 %98, %v32
    %v100 = vpop.permute.xlu0 %99
    %103 = vset.pattern.permute.xlu0 0
    %104 = vperm.xlu0 %103, %v33
    %v105 = vpop.permute.xlu0 %104
    %108 = vset.pattern.permute.xlu0 0
    %109 = vperm.xlu0 %108, %v34
    %v110 = vpop.permute.xlu0 %109
    %113 = vset.pattern.permute.xlu0 0
    %114 = vperm.xlu0 %113, %v35
    %v115 = vpop.permute.xlu0 %114
    %v118 = vperm.slane %v36, 0
    %v120 = vadd.f32 %v40, %v118
    %v121 = vadd.f32 %v45, %v118
    %v122 = vadd.f32 %v50, %v118
    %v123 = vadd.f32 %v55, %v118
    %v124 = vadd.f32 %v60, %v118
    %v125 = vadd.f32 %v65, %v118
    %v126 = vadd.f32 %v70, %v118
    %v127 = vadd.f32 %v75, %v118
    %v128 = vadd.f32 %v80, %v118
    %v129 = vadd.f32 %v85, %v118
    %v130 = vadd.f32 %v90, %v118
    %v131 = vadd.f32 %v95, %v118
    %v132 = vadd.f32 %v100, %v118
    %v133 = vadd.f32 %v105, %v118
    %v134 = vadd.f32 %v110, %v118
    %v135 = vadd.f32 %v115, %v118
    %vm136 = vcmp.gt.f32.partialorder %v120, 0.0
    %vm137 = vcmp.gt.f32.partialorder %v121, 0.0
    %vm138 = vcmp.gt.f32.partialorder %v122, 0.0
    %vm139 = vcmp.gt.f32.partialorder %v123, 0.0
    %vm140 = vcmp.gt.f32.partialorder %v124, 0.0
    %vm141 = vcmp.gt.f32.partialorder %v125, 0.0
    %vm142 = vcmp.gt.f32.partialorder %v126, 0.0
    %vm143 = vcmp.gt.f32.partialorder %v127, 0.0
    %vm144 = vcmp.gt.f32.partialorder %v128, 0.0
    %vm145 = vcmp.gt.f32.partialorder %v129, 0.0
    %vm146 = vcmp.gt.f32.partialorder %v130, 0.0
    %vm147 = vcmp.gt.f32.partialorder %v131, 0.0
    %vm148 = vcmp.gt.f32.partialorder %v132, 0.0
    %vm149 = vcmp.gt.f32.partialorder %v133, 0.0
    %vm150 = vcmp.gt.f32.partialorder %v134, 0.0
    %vm151 = vcmp.gt.f32.partialorder %v135, 0.0
    %v152 = vmul.f32 %v120, 0.2
    %v153 = vmul.f32 %v121, 0.2
    %v154 = vmul.f32 %v122, 0.2
    %v155 = vmul.f32 %v123, 0.2
    %v156 = vmul.f32 %v124, 0.2
    %v157 = vmul.f32 %v125, 0.2
    %v158 = vmul.f32 %v126, 0.2
    %v159 = vmul.f32 %v127, 0.2
    %v160 = vmul.f32 %v128, 0.2
    %v161 = vmul.f32 %v129, 0.2
    %v162 = vmul.f32 %v130, 0.2
    %v163 = vmul.f32 %v131, 0.2
    %v164 = vmul.f32 %v132, 0.2
    %v165 = vmul.f32 %v133, 0.2
    %v166 = vmul.f32 %v134, 0.2
    %v167 = vmul.f32 %v135, 0.2
    %v168 = vsel %vm136, %v120, %v152
    %v169 = vsel %vm137, %v121, %v153
    %v170 = vsel %vm138, %v122, %v154
    %v171 = vsel %vm139, %v123, %v155
    %v172 = vsel %vm140, %v124, %v156
    %v173 = vsel %vm141, %v125, %v157
    %v174 = vsel %vm142, %v126, %v158
    %v175 = vsel %vm143, %v127, %v159
    %v176 = vsel %vm144, %v128, %v160
    %v177 = vsel %vm145, %v129, %v161
    %v178 = vsel %vm146, %v130, %v162
    %v179 = vsel %vm147, %v131, %v163
    %v180 = vsel %vm148, %v132, %v164
    %v181 = vsel %vm149, %v133, %v165
    %v182 = vsel %vm150, %v134, %v166
    %v183 = vsel %vm151, %v135, %v167
    %v184 = vld [vmem:[%s2] sm:$0xf]
    %v185 = vld [vmem:[%s2 + $0x4] sm:$0xf]
    %v186 = vld [vmem:[%s2 + $0x8] sm:$0xf]
    %v187 = vld [vmem:[%s2 + $0xc] sm:$0xf]
    %v188 = vld [vmem:[%s2 + $0x10] sm:$0xf]
    %v189 = vld [vmem:[%s2 + $0x14] sm:$0xf]
    %v190 = vld [vmem:[%s2 + $0x18] sm:$0xf]
    %v191 = vld [vmem:[%s2 + $0x1c] sm:$0xf]
    %v192 = vld [vmem:[%s2 + $0x20] sm:$0xf]
    %v193 = vld [vmem:[%s2 + $0x24] sm:$0xf]
    %v194 = vld [vmem:[%s2 + $0x28] sm:$0xf]
    %v195 = vld [vmem:[%s2 + $0x2c] sm:$0xf]
    %v196 = vld [vmem:[%s2 + $0x30] sm:$0xf]
    %v197 = vld [vmem:[%s2 + $0x34] sm:$0xf]
    %v198 = vld [vmem:[%s2 + $0x38] sm:$0xf]
    %v199 = vld [vmem:[%s2 + $0x3c] sm:$0xf]
    %v200 = vunpack.c.l.bf16 %v184
    %v201 = vunpack.c.l.bf16 %v185
    %v202 = vunpack.c.l.bf16 %v186
    %v203 = vunpack.c.l.bf16 %v187
    %v204 = vunpack.c.l.bf16 %v188
    %v205 = vunpack.c.l.bf16 %v189
    %v206 = vunpack.c.l.bf16 %v190
    %v207 = vunpack.c.l.bf16 %v191
    %v208 = vunpack.c.l.bf16 %v192
    %v209 = vunpack.c.l.bf16 %v193
    %v210 = vunpack.c.l.bf16 %v194
    %v211 = vunpack.c.l.bf16 %v195
    %v212 = vunpack.c.l.bf16 %v196
    %v213 = vunpack.c.l.bf16 %v197
    %v214 = vunpack.c.l.bf16 %v198
    %v215 = vunpack.c.l.bf16 %v199
    %v216 = vadd.f32 %v168, %v200
    %v217 = vadd.f32 %v169, %v201
    %v218 = vadd.f32 %v170, %v202
    %v219 = vadd.f32 %v171, %v203
    %v220 = vadd.f32 %v172, %v204
    %v221 = vadd.f32 %v173, %v205
    %v222 = vadd.f32 %v174, %v206
    %v223 = vadd.f32 %v175, %v207
    %v224 = vadd.f32 %v176, %v208
    %v225 = vadd.f32 %v177, %v209
    %v226 = vadd.f32 %v178, %v210
    %v227 = vadd.f32 %v179, %v211
    %v228 = vadd.f32 %v180, %v212
    %v229 = vadd.f32 %v181, %v213
    %v230 = vadd.f32 %v182, %v214
    %v231 = vadd.f32 %v183, %v215
    %232 = vmax.xlane.f32.xlu0 %v216
    %v233 = vpop.xlane.xlu0 %232
    %234 = vmax.xlane.f32.xlu0 %v217
    %v235 = vpop.xlane.xlu0 %234
    %236 = vmax.xlane.f32.xlu0 %v218
    %v237 = vpop.xlane.xlu0 %236
    %238 = vmax.xlane.f32.xlu0 %v219
    %v239 = vpop.xlane.xlu0 %238
    %240 = vmax.xlane.f32.xlu0 %v220
    %v241 = vpop.xlane.xlu0 %240
    %242 = vmax.xlane.f32.xlu0 %v221
    %v243 = vpop.xlane.xlu0 %242
    %244 = vmax.xlane.f32.xlu0 %v222
    %v245 = vpop.xlane.xlu0 %244
    %246 = vmax.xlane.f32.xlu0 %v223
    %v247 = vpop.xlane.xlu0 %246
    %248 = vmax.xlane.f32.xlu0 %v224
    %v249 = vpop.xlane.xlu0 %248
    %250 = vmax.xlane.f32.xlu0 %v225
    %v251 = vpop.xlane.xlu0 %250
    %252 = vmax.xlane.f32.xlu0 %v226
    %v253 = vpop.xlane.xlu0 %252
    %254 = vmax.xlane.f32.xlu0 %v227
    %v255 = vpop.xlane.xlu0 %254
    %256 = vmax.xlane.f32.xlu0 %v228
    %v257 = vpop.xlane.xlu0 %256
    %258 = vmax.xlane.f32.xlu0 %v229
    %v259 = vpop.xlane.xlu0 %258
    %260 = vmax.xlane.f32.xlu0 %v230
    %v261 = vpop.xlane.xlu0 %260
    %262 = vmax.xlane.f32.xlu0 %v231
    %v263 = vpop.xlane.xlu0 %262
    %v264 = vsub.f32 %v216, %v233
    %v265 = vsub.f32 %v217, %v235
    %v266 = vsub.f32 %v218, %v237
    %v267 = vsub.f32 %v219, %v239
    %v268 = vsub.f32 %v220, %v241
    %v269 = vsub.f32 %v221, %v243
    %v270 = vsub.f32 %v222, %v245
    %v271 = vsub.f32 %v223, %v247
    %v272 = vsub.f32 %v224, %v249
    %v273 = vsub.f32 %v225, %v251
    %v274 = vsub.f32 %v226, %v253
    %v275 = vsub.f32 %v227, %v255
    %v276 = vsub.f32 %v228, %v257
    %v277 = vsub.f32 %v229, %v259
    %v278 = vsub.f32 %v230, %v261
    %v279 = vsub.f32 %v231, %v263
    %v280 = vmul.f32 %v264, 1.442695
    %v281 = vpow.pop %v280
    %v282 = vmul.f32 %v265, 1.442695
    %v283 = vpow.pop %v282
    %v284 = vmul.f32 %v266, 1.442695
    %v285 = vpow.pop %v284
    %v286 = vmul.f32 %v267, 1.442695
    %v287 = vpow.pop %v286
    %v288 = vmul.f32 %v268, 1.442695
    %v289 = vpow.pop %v288
    %v290 = vmul.f32 %v269, 1.442695
    %v291 = vpow.pop %v290
    %v292 = vmul.f32 %v270, 1.442695
    %v293 = vpow.pop %v292
    %v294 = vmul.f32 %v271, 1.442695
    %v295 = vpow.pop %v294
    %v296 = vmul.f32 %v272, 1.442695
    %v297 = vpow.pop %v296
    %v298 = vmul.f32 %v273, 1.442695
    %v299 = vpow.pop %v298
    %v300 = vmul.f32 %v274, 1.442695
    %v301 = vpow.pop %v300
    %v302 = vmul.f32 %v275, 1.442695
    %v303 = vpow.pop %v302
    %v304 = vmul.f32 %v276, 1.442695
    %v305 = vpow.pop %v304
    %v306 = vmul.f32 %v277, 1.442695
    %v307 = vpow.pop %v306
    %v308 = vmul.f32 %v278, 1.442695
    %v309 = vpow.pop %v308
    %v310 = vmul.f32 %v279, 1.442695
    %v311 = vpow.pop %v310
    %312 = vadd.xlane.f32.xlu0 %v281
    %v313 = vpop.xlane.xlu0 %312
    %314 = vadd.xlane.f32.xlu0 %v283
    %v315 = vpop.xlane.xlu0 %314
    %316 = vadd.xlane.f32.xlu0 %v285
    %v317 = vpop.xlane.xlu0 %316
    %318 = vadd.xlane.f32.xlu0 %v287
    %v319 = vpop.xlane.xlu0 %318
    %320 = vadd.xlane.f32.xlu0 %v289
    %v321 = vpop.xlane.xlu0 %320
    %322 = vadd.xlane.f32.xlu0 %v291
    %v323 = vpop.xlane.xlu0 %322
    %324 = vadd.xlane.f32.xlu0 %v293
    %v325 = vpop.xlane.xlu0 %324
    %326 = vadd.xlane.f32.xlu0 %v295
    %v327 = vpop.xlane.xlu0 %326
    %328 = vadd.xlane.f32.xlu0 %v297
    %v329 = vpop.xlane.xlu0 %328
    %330 = vadd.xlane.f32.xlu0 %v299
    %v331 = vpop.xlane.xlu0 %330
    %332 = vadd.xlane.f32.xlu0 %v301
    %v333 = vpop.xlane.xlu0 %332
    %334 = vadd.xlane.f32.xlu0 %v303
    %v335 = vpop.xlane.xlu0 %334
    %336 = vadd.xlane.f32.xlu0 %v305
    %v337 = vpop.xlane.xlu0 %336
    %338 = vadd.xlane.f32.xlu0 %v307
    %v339 = vpop.xlane.xlu0 %338
    %340 = vadd.xlane.f32.xlu0 %v309
    %v341 = vpop.xlane.xlu0 %340
    %342 = vadd.xlane.f32.xlu0 %v311
    %v343 = vpop.xlane.xlu0 %342
    %v344 = vrcp.pop %v313
    %v345 = vmul.f32 %v313, %v344
    %v346 = vsub.f32 1.0, %v345
    %v347 = vmul.f32 %v344, %v346
    %v348 = vadd.f32 %v344, %v347
    %vm349 = vweird.f32 %v313
    %vm350 = vweird.f32 %v344
    %vm351 = vmor %vm349, %vm350
    %v352 = vsel %vm351, %v344, %v348
    %v353 = vand.u32 2147483647, %v313
    %vm354 = vcmp.eq.f32.partialorder %v353, 8.507059e+37
    %v355 = vand.u32 %v313, 2147483648
    %v356 = vor.u32 1.1754944e-38, %v355
    %v357 = vsel %vm354, %v356, %v352
    %v358 = vmul.f32 1.0, %v357
    %v359 = vrcp.pop %v315
    %v360 = vmul.f32 %v315, %v359
    %v361 = vsub.f32 1.0, %v360
    %v362 = vmul.f32 %v359, %v361
    %v363 = vadd.f32 %v359, %v362
    %vm364 = vweird.f32 %v315
    %vm365 = vweird.f32 %v359
    %vm366 = vmor %vm364, %vm365
    %v367 = vsel %vm366, %v359, %v363
    %v368 = vand.u32 2147483647, %v315
    %vm369 = vcmp.eq.f32.partialorder %v368, 8.507059e+37
    %v370 = vand.u32 %v315, 2147483648
    %v371 = vor.u32 1.1754944e-38, %v370
    %v372 = vsel %vm369, %v371, %v367
    %v373 = vmul.f32 1.0, %v372
    %v374 = vrcp.pop %v317
    %v375 = vmul.f32 %v317, %v374
    %v376 = vsub.f32 1.0, %v375
    %v377 = vmul.f32 %v374, %v376
    %v378 = vadd.f32 %v374, %v377
    %vm379 = vweird.f32 %v317
    %vm380 = vweird.f32 %v374
    %vm381 = vmor %vm379, %vm380
    %v382 = vsel %vm381, %v374, %v378
    %v383 = vand.u32 2147483647, %v317
    %vm384 = vcmp.eq.f32.partialorder %v383, 8.507059e+37
    %v385 = vand.u32 %v317, 2147483648
    %v386 = vor.u32 1.1754944e-38, %v385
    %v387 = vsel %vm384, %v386, %v382
    %v388 = vmul.f32 1.0, %v387
    %v389 = vrcp.pop %v319
    %v390 = vmul.f32 %v319, %v389
    %v391 = vsub.f32 1.0, %v390
    %v392 = vmul.f32 %v389, %v391
    %v393 = vadd.f32 %v389, %v392
    %vm394 = vweird.f32 %v319
    %vm395 = vweird.f32 %v389
    %vm396 = vmor %vm394, %vm395
    %v397 = vsel %vm396, %v389, %v393
    %v398 = vand.u32 2147483647, %v319
    %vm399 = vcmp.eq.f32.partialorder %v398, 8.507059e+37
    %v400 = vand.u32 %v319, 2147483648
    %v401 = vor.u32 1.1754944e-38, %v400
    %v402 = vsel %vm399, %v401, %v397
    %v403 = vmul.f32 1.0, %v402
    %v404 = vrcp.pop %v321
    %v405 = vmul.f32 %v321, %v404
    %v406 = vsub.f32 1.0, %v405
    %v407 = vmul.f32 %v404, %v406
    %v408 = vadd.f32 %v404, %v407
    %vm409 = vweird.f32 %v321
    %vm410 = vweird.f32 %v404
    %vm411 = vmor %vm409, %vm410
    %v412 = vsel %vm411, %v404, %v408
    %v413 = vand.u32 2147483647, %v321
    %vm414 = vcmp.eq.f32.partialorder %v413, 8.507059e+37
    %v415 = vand.u32 %v321, 2147483648
    %v416 = vor.u32 1.1754944e-38, %v415
    %v417 = vsel %vm414, %v416, %v412
    %v418 = vmul.f32 1.0, %v417
    %v419 = vrcp.pop %v323
    %v420 = vmul.f32 %v323, %v419
    %v421 = vsub.f32 1.0, %v420
    %v422 = vmul.f32 %v419, %v421
    %v423 = vadd.f32 %v419, %v422
    %vm424 = vweird.f32 %v323
    %vm425 = vweird.f32 %v419
    %vm426 = vmor %vm424, %vm425
    %v427 = vsel %vm426, %v419, %v423
    %v428 = vand.u32 2147483647, %v323
    %vm429 = vcmp.eq.f32.partialorder %v428, 8.507059e+37
    %v430 = vand.u32 %v323, 2147483648
    %v431 = vor.u32 1.1754944e-38, %v430
    %v432 = vsel %vm429, %v431, %v427
    %v433 = vmul.f32 1.0, %v432
    %v434 = vrcp.pop %v325
    %v435 = vmul.f32 %v325, %v434
    %v436 = vsub.f32 1.0, %v435
    %v437 = vmul.f32 %v434, %v436
    %v438 = vadd.f32 %v434, %v437
    %vm439 = vweird.f32 %v325
    %vm440 = vweird.f32 %v434
    %vm441 = vmor %vm439, %vm440
    %v442 = vsel %vm441, %v434, %v438
    %v443 = vand.u32 2147483647, %v325
    %vm444 = vcmp.eq.f32.partialorder %v443, 8.507059e+37
    %v445 = vand.u32 %v325, 2147483648
    %v446 = vor.u32 1.1754944e-38, %v445
    %v447 = vsel %vm444, %v446, %v442
    %v448 = vmul.f32 1.0, %v447
    %v449 = vrcp.pop %v327
    %v450 = vmul.f32 %v327, %v449
    %v451 = vsub.f32 1.0, %v450
    %v452 = vmul.f32 %v449, %v451
    %v453 = vadd.f32 %v449, %v452
    %vm454 = vweird.f32 %v327
    %vm455 = vweird.f32 %v449
    %vm456 = vmor %vm454, %vm455
    %v457 = vsel %vm456, %v449, %v453
    %v458 = vand.u32 2147483647, %v327
    %vm459 = vcmp.eq.f32.partialorder %v458, 8.507059e+37
    %v460 = vand.u32 %v327, 2147483648
    %v461 = vor.u32 1.1754944e-38, %v460
    %v462 = vsel %vm459, %v461, %v457
    %v463 = vmul.f32 1.0, %v462
    %v464 = vrcp.pop %v329
    %v465 = vmul.f32 %v329, %v464
    %v466 = vsub.f32 1.0, %v465
    %v467 = vmul.f32 %v464, %v466
    %v468 = vadd.f32 %v464, %v467
    %vm469 = vweird.f32 %v329
    %vm470 = vweird.f32 %v464
    %vm471 = vmor %vm469, %vm470
    %v472 = vsel %vm471, %v464, %v468
    %v473 = vand.u32 2147483647, %v329
    %vm474 = vcmp.eq.f32.partialorder %v473, 8.507059e+37
    %v475 = vand.u32 %v329, 2147483648
    %v476 = vor.u32 1.1754944e-38, %v475
    %v477 = vsel %vm474, %v476, %v472
    %v478 = vmul.f32 1.0, %v477
    %v479 = vrcp.pop %v331
    %v480 = vmul.f32 %v331, %v479
    %v481 = vsub.f32 1.0, %v480
    %v482 = vmul.f32 %v479, %v481
    %v483 = vadd.f32 %v479, %v482
    %vm484 = vweird.f32 %v331
    %vm485 = vweird.f32 %v479
    %vm486 = vmor %vm484, %vm485
    %v487 = vsel %vm486, %v479, %v483
    %v488 = vand.u32 2147483647, %v331
    %vm489 = vcmp.eq.f32.partialorder %v488, 8.507059e+37
    %v490 = vand.u32 %v331, 2147483648
    %v491 = vor.u32 1.1754944e-38, %v490
    %v492 = vsel %vm489, %v491, %v487
    %v493 = vmul.f32 1.0, %v492
    %v494 = vrcp.pop %v333
    %v495 = vmul.f32 %v333, %v494
    %v496 = vsub.f32 1.0, %v495
    %v497 = vmul.f32 %v494, %v496
    %v498 = vadd.f32 %v494, %v497
    %vm499 = vweird.f32 %v333
    %vm500 = vweird.f32 %v494
    %vm501 = vmor %vm499, %vm500
    %v502 = vsel %vm501, %v494, %v498
    %v503 = vand.u32 2147483647, %v333
    %vm504 = vcmp.eq.f32.partialorder %v503, 8.507059e+37
    %v505 = vand.u32 %v333, 2147483648
    %v506 = vor.u32 1.1754944e-38, %v505
    %v507 = vsel %vm504, %v506, %v502
    %v508 = vmul.f32 1.0, %v507
    %v509 = vrcp.pop %v335
    %v510 = vmul.f32 %v335, %v509
    %v511 = vsub.f32 1.0, %v510
    %v512 = vmul.f32 %v509, %v511
    %v513 = vadd.f32 %v509, %v512
    %vm514 = vweird.f32 %v335
    %vm515 = vweird.f32 %v509
    %vm516 = vmor %vm514, %vm515
    %v517 = vsel %vm516, %v509, %v513
    %v518 = vand.u32 2147483647, %v335
    %vm519 = vcmp.eq.f32.partialorder %v518, 8.507059e+37
    %v520 = vand.u32 %v335, 2147483648
    %v521 = vor.u32 1.1754944e-38, %v520
    %v522 = vsel %vm519, %v521, %v517
    %v523 = vmul.f32 1.0, %v522
    %v524 = vrcp.pop %v337
    %v525 = vmul.f32 %v337, %v524
    %v526 = vsub.f32 1.0, %v525
    %v527 = vmul.f32 %v524, %v526
    %v528 = vadd.f32 %v524, %v527
    %vm529 = vweird.f32 %v337
    %vm530 = vweird.f32 %v524
    %vm531 = vmor %vm529, %vm530
    %v532 = vsel %vm531, %v524, %v528
    %v533 = vand.u32 2147483647, %v337
    %vm534 = vcmp.eq.f32.partialorder %v533, 8.507059e+37
    %v535 = vand.u32 %v337, 2147483648
    %v536 = vor.u32 1.1754944e-38, %v535
    %v537 = vsel %vm534, %v536, %v532
    %v538 = vmul.f32 1.0, %v537
    %v539 = vrcp.pop %v339
    %v540 = vmul.f32 %v339, %v539
    %v541 = vsub.f32 1.0, %v540
    %v542 = vmul.f32 %v539, %v541
    %v543 = vadd.f32 %v539, %v542
    %vm544 = vweird.f32 %v339
    %vm545 = vweird.f32 %v539
    %vm546 = vmor %vm544, %vm545
    %v547 = vsel %vm546, %v539, %v543
    %v548 = vand.u32 2147483647, %v339
    %vm549 = vcmp.eq.f32.partialorder %v548, 8.507059e+37
    %v550 = vand.u32 %v339, 2147483648
    %v551 = vor.u32 1.1754944e-38, %v550
    %v552 = vsel %vm549, %v551, %v547
    %v553 = vmul.f32 1.0, %v552
    %v554 = vrcp.pop %v341
    %v555 = vmul.f32 %v341, %v554
    %v556 = vsub.f32 1.0, %v555
    %v557 = vmul.f32 %v554, %v556
    %v558 = vadd.f32 %v554, %v557
    %vm559 = vweird.f32 %v341
    %vm560 = vweird.f32 %v554
    %vm561 = vmor %vm559, %vm560
    %v562 = vsel %vm561, %v554, %v558
    %v563 = vand.u32 2147483647, %v341
    %vm564 = vcmp.eq.f32.partialorder %v563, 8.507059e+37
    %v565 = vand.u32 %v341, 2147483648
    %v566 = vor.u32 1.1754944e-38, %v565
    %v567 = vsel %vm564, %v566, %v562
    %v568 = vmul.f32 1.0, %v567
    %v569 = vrcp.pop %v343
    %v570 = vmul.f32 %v343, %v569
    %v571 = vsub.f32 1.0, %v570
    %v572 = vmul.f32 %v569, %v571
    %v573 = vadd.f32 %v569, %v572
    %vm574 = vweird.f32 %v343
    %vm575 = vweird.f32 %v569
    %vm576 = vmor %vm574, %vm575
    %v577 = vsel %vm576, %v569, %v573
    %v578 = vand.u32 2147483647, %v343
    %vm579 = vcmp.eq.f32.partialorder %v578, 8.507059e+37
    %v580 = vand.u32 %v343, 2147483648
    %v581 = vor.u32 1.1754944e-38, %v580
    %v582 = vsel %vm579, %v581, %v577
    %v583 = vmul.f32 1.0, %v582
    %v584 = vmul.f32 %v281, %v358
    %v585 = vmul.f32 %v283, %v373
    %v586 = vmul.f32 %v285, %v388
    %v587 = vmul.f32 %v287, %v403
    %v588 = vmul.f32 %v289, %v418
    %v589 = vmul.f32 %v291, %v433
    %v590 = vmul.f32 %v293, %v448
    %v591 = vmul.f32 %v295, %v463
    %v592 = vmul.f32 %v297, %v478
    %v593 = vmul.f32 %v299, %v493
    %v594 = vmul.f32 %v301, %v508
    %v595 = vmul.f32 %v303, %v523
    %v596 = vmul.f32 %v305, %v538
    %v597 = vmul.f32 %v307, %v553
    %v598 = vmul.f32 %v309, %v568
    %v599 = vmul.f32 %v311, %v583
    %600 = vst [vmem:[#allocation2] sm:$0xff] %v584
    %601 = vst [vmem:[#allocation2 + $0x8] sm:$0xff] %v585
    %602 = vst [vmem:[#allocation2 + $0x10] sm:$0xff] %v586
    %603 = vst [vmem:[#allocation2 + $0x18] sm:$0xff] %v587
    %604 = vst [vmem:[#allocation2 + $0x20] sm:$0xff] %v588
    %605 = vst [vmem:[#allocation2 + $0x28] sm:$0xff] %v589
    %606 = vst [vmem:[#allocation2 + $0x30] sm:$0xff] %v590
    %607 = vst [vmem:[#allocation2 + $0x38] sm:$0xff] %v591
    %608 = vst [vmem:[#allocation2 + $0x40] sm:$0xff] %v592
    %609 = vst [vmem:[#allocation2 + $0x48] sm:$0xff] %v593
    %610 = vst [vmem:[#allocation2 + $0x50] sm:$0xff] %v594
    %611 = vst [vmem:[#allocation2 + $0x58] sm:$0xff] %v595
    %612 = vst [vmem:[#allocation2 + $0x60] sm:$0xff] %v596
    %613 = vst [vmem:[#allocation2 + $0x68] sm:$0xff] %v597
    %614 = vst [vmem:[#allocation2 + $0x70] sm:$0xff] %v598
    %615 = vst [vmem:[#allocation2 + $0x78] sm:$0xff] %v599
    %v616 = vpack.c.bf16 %v585, %v584
    %v617 = vpack.c.bf16 %v587, %v586
    %v618 = vpack.c.bf16 %v589, %v588
    %v619 = vpack.c.bf16 %v591, %v590
    %v620 = vpack.c.bf16 %v593, %v592
    %v621 = vpack.c.bf16 %v595, %v594
    %v622 = vpack.c.bf16 %v597, %v596
    %v623 = vpack.c.bf16 %v599, %v598
    %v624 = vld [vmem:[%s3] sm:$0xf]
    %v625 = vld [vmem:[%s3 + $0x4] sm:$0xf]
    %v626 = vld [vmem:[%s3 + $0x8] sm:$0xf]
    %v627 = vld [vmem:[%s3 + $0xc] sm:$0xf]
    %v628 = vld [vmem:[%s3 + $0x10] sm:$0xf]
    %v629 = vld [vmem:[%s3 + $0x14] sm:$0xf]
    %v630 = vld [vmem:[%s3 + $0x18] sm:$0xf]
    %v631 = vld [vmem:[%s3 + $0x1c] sm:$0xf]
    %v632 = vld [vmem:[%s3 + $0x20] sm:$0xf]
    %v633 = vld [vmem:[%s3 + $0x24] sm:$0xf]
    %v634 = vld [vmem:[%s3 + $0x28] sm:$0xf]
    %v635 = vld [vmem:[%s3 + $0x2c] sm:$0xf]
    %v636 = vld [vmem:[%s3 + $0x30] sm:$0xf]
    %v637 = vld [vmem:[%s3 + $0x34] sm:$0xf]
    %v638 = vld [vmem:[%s3 + $0x38] sm:$0xf]
    %v639 = vld [vmem:[%s3 + $0x3c] sm:$0xf]
    %v656 = vunpack.c.l.b16 %v624
    %v657 = vunpack.c.l.b16 %v625
    %v658 = vunpack.c.l.b16 %v626
    %v659 = vunpack.c.l.b16 %v627
    %v660 = vunpack.c.l.b16 %v628
    %v661 = vunpack.c.l.b16 %v629
    %v662 = vunpack.c.l.b16 %v630
    %v663 = vunpack.c.l.b16 %v631
    %v664 = vunpack.c.l.b16 %v632
    %v665 = vunpack.c.l.b16 %v633
    %v666 = vunpack.c.l.b16 %v634
    %v667 = vunpack.c.l.b16 %v635
    %v668 = vunpack.c.l.b16 %v636
    %v669 = vunpack.c.l.b16 %v637
    %v670 = vunpack.c.l.b16 %v638
    %v671 = vunpack.c.l.b16 %v639
    %v672 = vpack.c.b16 %v657, %v656
    %v673 = vpack.c.b16 %v659, %v658
    %v674 = vpack.c.b16 %v661, %v660
    %v675 = vpack.c.b16 %v663, %v662
    %v676 = vpack.c.b16 %v665, %v664
    %v677 = vpack.c.b16 %v667, %v666
    %v678 = vpack.c.b16 %v669, %v668
    %v679 = vpack.c.b16 %v671, %v670
    %688 = vmatpush.bf16.msra.mxu0 %v679
    %689 = vmatpush.bf16.msra.mxu0 %v678
    %690 = vmatpush.bf16.msra.mxu0 %v677
    %691 = vmatpush.bf16.msra.mxu0 %v676
    %692 = vmatpush.bf16.msra.mxu0 %v675
    %693 = vmatpush.bf16.msra.mxu0 %v674
    %694 = vmatpush.bf16.msra.mxu0 %v673
    %695 = vmatpush.bf16.msra.mxu0 %v672
    %696 = vmatmul.bf16.gmra.mxu0 %v616
    %v697 = vpop.f32.mrf.mxu0
    %v698 = vadd.f32 0.0, %v697
    %v699 = vpop.f32.mrf.mxu0
    %v700 = vadd.f32 0.0, %v699
    %701 = vmatmul.bf16.gmra.mxu0 %v617
    %v702 = vpop.f32.mrf.mxu0
    %v703 = vadd.f32 0.0, %v702
    %v704 = vpop.f32.mrf.mxu0
    %v705 = vadd.f32 0.0, %v704
    %706 = vmatmul.bf16.gmra.mxu0 %v618
    %v707 = vpop.f32.mrf.mxu0
    %v708 = vadd.f32 0.0, %v707
    %v709 = vpop.f32.mrf.mxu0
    %v710 = vadd.f32 0.0, %v709
    %711 = vmatmul.bf16.gmra.mxu0 %v619
    %v712 = vpop.f32.mrf.mxu0
    %v713 = vadd.f32 0.0, %v712
    %v714 = vpop.f32.mrf.mxu0
    %v715 = vadd.f32 0.0, %v714
    %716 = vmatmul.bf16.gmra.mxu0 %v620
    %v717 = vpop.f32.mrf.mxu0
    %v718 = vadd.f32 0.0, %v717
    %v719 = vpop.f32.mrf.mxu0
    %v720 = vadd.f32 0.0, %v719
    %721 = vmatmul.bf16.gmra.mxu0 %v621
    %v722 = vpop.f32.mrf.mxu0
    %v723 = vadd.f32 0.0, %v722
    %v724 = vpop.f32.mrf.mxu0
    %v725 = vadd.f32 0.0, %v724
    %726 = vmatmul.bf16.gmra.mxu0 %v622
    %v727 = vpop.f32.mrf.mxu0
    %v728 = vadd.f32 0.0, %v727
    %v729 = vpop.f32.mrf.mxu0
    %v730 = vadd.f32 0.0, %v729
    %731 = vmatmul.bf16.gmra.mxu0 %v623
    %v732 = vpop.f32.mrf.mxu0
    %v733 = vadd.f32 0.0, %v732
    %v734 = vpop.f32.mrf.mxu0
    %v735 = vadd.f32 0.0, %v734
    %736 = vdwg.mxu0
    %vm737 = vcmp.gt.f32.partialorder %v698, 0.0
    %vm738 = vcmp.gt.f32.partialorder %v700, 0.0
    %vm739 = vcmp.gt.f32.partialorder %v703, 0.0
    %vm740 = vcmp.gt.f32.partialorder %v705, 0.0
    %vm741 = vcmp.gt.f32.partialorder %v708, 0.0
    %vm742 = vcmp.gt.f32.partialorder %v710, 0.0
    %vm743 = vcmp.gt.f32.partialorder %v713, 0.0
    %vm744 = vcmp.gt.f32.partialorder %v715, 0.0
    %vm745 = vcmp.gt.f32.partialorder %v718, 0.0
    %vm746 = vcmp.gt.f32.partialorder %v720, 0.0
    %vm747 = vcmp.gt.f32.partialorder %v723, 0.0
    %vm748 = vcmp.gt.f32.partialorder %v725, 0.0
    %vm749 = vcmp.gt.f32.partialorder %v728, 0.0
    %vm750 = vcmp.gt.f32.partialorder %v730, 0.0
    %vm751 = vcmp.gt.f32.partialorder %v733, 0.0
    %vm752 = vcmp.gt.f32.partialorder %v735, 0.0
    %v753 = vmin.f32 %v698, 0.0
    %v754 = vmin.f32 %v700, 0.0
    %v755 = vmin.f32 %v703, 0.0
    %v756 = vmin.f32 %v705, 0.0
    %v757 = vmin.f32 %v708, 0.0
    %v758 = vmin.f32 %v710, 0.0
    %v759 = vmin.f32 %v713, 0.0
    %v760 = vmin.f32 %v715, 0.0
    %v761 = vmin.f32 %v718, 0.0
    %v762 = vmin.f32 %v720, 0.0
    %v763 = vmin.f32 %v723, 0.0
    %v764 = vmin.f32 %v725, 0.0
    %v765 = vmin.f32 %v728, 0.0
    %v766 = vmin.f32 %v730, 0.0
    %v767 = vmin.f32 %v733, 0.0
    %v768 = vmin.f32 %v735, 0.0
    %v769 = vmul.f32 %v753, 1.442695
    %v770 = vpow.pop %v769
    %v771 = vmul.f32 %v754, 1.442695
    %v772 = vpow.pop %v771
    %v773 = vmul.f32 %v755, 1.442695
    %v774 = vpow.pop %v773
    %v775 = vmul.f32 %v756, 1.442695
    %v776 = vpow.pop %v775
    %v777 = vmul.f32 %v757, 1.442695
    %v778 = vpow.pop %v777
    %v779 = vmul.f32 %v758, 1.442695
    %v780 = vpow.pop %v779
    %v781 = vmul.f32 %v759, 1.442695
    %v782 = vpow.pop %v781
    %v783 = vmul.f32 %v760, 1.442695
    %v784 = vpow.pop %v783
    %v785 = vmul.f32 %v761, 1.442695
    %v786 = vpow.pop %v785
    %v787 = vmul.f32 %v762, 1.442695
    %v788 = vpow.pop %v787
    %v789 = vmul.f32 %v763, 1.442695
    %v790 = vpow.pop %v789
    %v791 = vmul.f32 %v764, 1.442695
    %v792 = vpow.pop %v791
    %v793 = vmul.f32 %v765, 1.442695
    %v794 = vpow.pop %v793
    %v795 = vmul.f32 %v766, 1.442695
    %v796 = vpow.pop %v795
    %v797 = vmul.f32 %v767, 1.442695
    %v798 = vpow.pop %v797
    %v799 = vmul.f32 %v768, 1.442695
    %v800 = vpow.pop %v799
    %v801 = vsub.f32 %v770, 1.0
    %v802 = vsub.f32 %v772, 1.0
    %v803 = vsub.f32 %v774, 1.0
    %v804 = vsub.f32 %v776, 1.0
    %v805 = vsub.f32 %v778, 1.0
    %v806 = vsub.f32 %v780, 1.0
    %v807 = vsub.f32 %v782, 1.0
    %v808 = vsub.f32 %v784, 1.0
    %v809 = vsub.f32 %v786, 1.0
    %v810 = vsub.f32 %v788, 1.0
    %v811 = vsub.f32 %v790, 1.0
    %v812 = vsub.f32 %v792, 1.0
    %v813 = vsub.f32 %v794, 1.0
    %v814 = vsub.f32 %v796, 1.0
    %v815 = vsub.f32 %v798, 1.0
    %v816 = vsub.f32 %v800, 1.0
    %v817 = vsel %vm737, %v698, %v801
    %v818 = vsel %vm738, %v700, %v802
    %v819 = vsel %vm739, %v703, %v803
    %v820 = vsel %vm740, %v705, %v804
    %v821 = vsel %vm741, %v708, %v805
    %v822 = vsel %vm742, %v710, %v806
    %v823 = vsel %vm743, %v713, %v807
    %v824 = vsel %vm744, %v715, %v808
    %v825 = vsel %vm745, %v718, %v809
    %v826 = vsel %vm746, %v720, %v810
    %v827 = vsel %vm747, %v723, %v811
    %v828 = vsel %vm748, %v725, %v812
    %v829 = vsel %vm749, %v728, %v813
    %v830 = vsel %vm750, %v730, %v814
    %v831 = vsel %vm751, %v733, %v815
    %v832 = vsel %vm752, %v735, %v816
    %v833 = vpack.c.bf16 %v817, %v817
    %v834 = vpack.c.bf16 %v818, %v818
    %v835 = vpack.c.bf16 %v819, %v819
    %v836 = vpack.c.bf16 %v820, %v820
    %v837 = vpack.c.bf16 %v821, %v821
    %v838 = vpack.c.bf16 %v822, %v822
    %v839 = vpack.c.bf16 %v823, %v823
    %v840 = vpack.c.bf16 %v824, %v824
    %v841 = vpack.c.bf16 %v825, %v825
    %v842 = vpack.c.bf16 %v826, %v826
    %v843 = vpack.c.bf16 %v827, %v827
    %v844 = vpack.c.bf16 %v828, %v828
    %v845 = vpack.c.bf16 %v829, %v829
    %v846 = vpack.c.bf16 %v830, %v830
    %v847 = vpack.c.bf16 %v831, %v831
    %v848 = vpack.c.bf16 %v832, %v832
    %849 = vst [vmem:[%s4] sm:$0xf] %v833
    %850 = vst [vmem:[%s4 + $0x4] sm:$0xf] %v834
    %851 = vst [vmem:[%s4 + $0x8] sm:$0xf] %v835
    %852 = vst [vmem:[%s4 + $0xc] sm:$0xf] %v836
    %853 = vst [vmem:[%s4 + $0x10] sm:$0xf] %v837
    %854 = vst [vmem:[%s4 + $0x14] sm:$0xf] %v838
    %855 = vst [vmem:[%s4 + $0x18] sm:$0xf] %v839
    %856 = vst [vmem:[%s4 + $0x1c] sm:$0xf] %v840
    %857 = vst [vmem:[%s4 + $0x20] sm:$0xf] %v841
    %858 = vst [vmem:[%s4 + $0x24] sm:$0xf] %v842
    %859 = vst [vmem:[%s4 + $0x28] sm:$0xf] %v843
    %860 = vst [vmem:[%s4 + $0x2c] sm:$0xf] %v844
    %861 = vst [vmem:[%s4 + $0x30] sm:$0xf] %v845
    %862 = vst [vmem:[%s4 + $0x34] sm:$0xf] %v846
    %863 = vst [vmem:[%s4 + $0x38] sm:$0xf] %v847
    %864 = vst [vmem:[%s4 + $0x3c] sm:$0xf] %v848
    // Predicated region
    $region18: #{_lambda_.5} parent=1 // pred_check
      _
    $region19: #{_lambda_.5} parent=1 // pred_check_branch
      %866 = sbr.rel (0) target = $region21
    $region20: #{_lambda_.5} parent=1 // pred_region
      _
    $region21: #{_lambda_.5} parent=1 // pred_fallthru
      _
    // Predicated region
    $region22: #{_lambda_.5} parent=1 // pred_check
      _
    $region23: #{_lambda_.5} parent=1 // pred_check_branch
      %868 = sbr.rel (0) target = $region25
    $region24: #{_lambda_.5} parent=1 // pred_region
      %870 = vsyncadd [#allocation3], 0
      %s871 = sshll.u32 [#allocation2], 4
      %s872 = int_to_ptr.vmem [resolvable:$true] %s871
      %s873 = sshll.u32 %s5, 4
      %s874 = int_to_ptr.hbm [resolvable:$true] %s873
      %879 = dma.vmem_to_hbm [thread:$0]  %s872, 2048, %s874, [#allocation3], 128, 128, 8
    $region25: #{_lambda_.5} parent=1 // pred_fallthru
      _
    // Predicated region
    $region26: #{_lambda_.5} parent=1 // pred_check
      _
    $region27: #{_lambda_.5} parent=1 // pred_check_branch
      %881 = sbr.rel (0) target = $region29
    $region28: #{_lambda_.5} parent=1 // pred_region
      _
    $region29: #{_lambda_.5} parent=1 // pred_fallthru
      _
    // Predicated region
    $region30: #{_lambda_.5} parent=1 // pred_check
      _
    $region31: #{_lambda_.5} parent=1 // pred_check_branch
      %883 = sbr.rel (0) target = $region33
    $region32: #{_lambda_.5} parent=1 // pred_region
      %885 = dma.done [#allocation3], 2048
    $region33: #{_lambda_.5} parent=1 // pred_fallthru
      _
    %886 = vsyncpa [#allocation3], 1

// kernel: _lambda_.6
$region0: #{_lambda_.6}
  #allocation0 [shape = 'u32[]', space=smem, size = 0x4, offset = 0x4, fixed_abs, tag = 'smem constant byte address 0x4 - core index']
  #allocation1 [shape = 'u32[72,128]{1,0:T(1,128)}', space=vmem, size = 0x9000, scoped, tag = 'internal scratch']
  %s0 = inlined_call_operand.vmem [shape: bf16[128,128], index: 0, kind: input, shape index: {}]
  %s1 = inlined_call_operand.vmem [shape: bf16[128,128], index: 1, kind: input, shape index: {}]
  %s2 = inlined_call_operand.vmem [shape: bf16[128,128], index: 2, kind: input, shape index: {}]
  %s3 = inlined_call_operand.vmem [shape: bf16[128,128], index: 3, kind: output, shape index: {0}]
  %s4 = inlined_call_operand.vmem [shape: f32[128,128], index: 4, kind: output, shape index: {1}]
  %5 = xla_tuple %s3, %s4
  %s6 = sld [smem:[#allocation0]]
  $region30: #{_lambda_.6} parent=0
    _
  %s8 = ssub.s32 1, %s6
  %s9 = scalar_select 0, %s8, %s6
  // Predicated region
  $region2: #{_lambda_.6} parent=0 // pred_check
    _
  $region3: #{_lambda_.6} parent=0 // pred_check_branch
    %11 = sbr.rel (0) target = $region5
  $region4: #{_lambda_.6} parent=0 // pred_region
    _
  $region5: #{_lambda_.6} parent=0 // pred_fallthru
    _
  // Predicated region
  $region6: #{_lambda_.6} parent=0 // pred_check
    _
  $region7: #{_lambda_.6} parent=0 // pred_check_branch
    %13 = sbr.rel (0) target = $region9
  $region8: #{_lambda_.6} parent=0 // pred_region
    _
  $region9: #{_lambda_.6} parent=0 // pred_fallthru
    _
  // Predicated region
  $region10: #{_lambda_.6} parent=0 // pred_check
    _
  $region11: #{_lambda_.6} parent=0 // pred_check_branch
    %15 = sbr.rel (0) target = $region13
  $region12: #{_lambda_.6} parent=0 // pred_region
    _
  $region13: #{_lambda_.6} parent=0 // pred_fallthru
    _
  %v16 = vld [vmem:[%s0] sm:$0xf]
  %v17 = vld [vmem:[%s0 + $0x4] sm:$0xf]
  %v18 = vld [vmem:[%s0 + $0x8] sm:$0xf]
  %v19 = vld [vmem:[%s0 + $0xc] sm:$0xf]
  %v20 = vld [vmem:[%s0 + $0x10] sm:$0xf]
  %v21 = vld [vmem:[%s0 + $0x14] sm:$0xf]
  %v22 = vld [vmem:[%s0 + $0x18] sm:$0xf]
  %v23 = vld [vmem:[%s0 + $0x1c] sm:$0xf]
  %v24 = vld [vmem:[%s0 + $0x20] sm:$0xf]
  %v25 = vld [vmem:[%s0 + $0x24] sm:$0xf]
  %v26 = vld [vmem:[%s0 + $0x28] sm:$0xf]
  %v27 = vld [vmem:[%s0 + $0x2c] sm:$0xf]
  %v28 = vld [vmem:[%s0 + $0x30] sm:$0xf]
  %v29 = vld [vmem:[%s0 + $0x34] sm:$0xf]
  %v30 = vld [vmem:[%s0 + $0x38] sm:$0xf]
  %v31 = vld [vmem:[%s0 + $0x3c] sm:$0xf]
  %v32 = vld [vmem:[%s1] sm:$0xf]
  %v33 = vld [vmem:[%s1 + $0x4] sm:$0xf]
  %v34 = vld [vmem:[%s1 + $0x8] sm:$0xf]
  %v35 = vld [vmem:[%s1 + $0xc] sm:$0xf]
  %v36 = vld [vmem:[%s1 + $0x10] sm:$0xf]
  %v37 = vld [vmem:[%s1 + $0x14] sm:$0xf]
  %v38 = vld [vmem:[%s1 + $0x18] sm:$0xf]
  %v39 = vld [vmem:[%s1 + $0x1c] sm:$0xf]
  %v40 = vld [vmem:[%s1 + $0x20] sm:$0xf]
  %v41 = vld [vmem:[%s1 + $0x24] sm:$0xf]
  %v42 = vld [vmem:[%s1 + $0x28] sm:$0xf]
  %v43 = vld [vmem:[%s1 + $0x2c] sm:$0xf]
  %v44 = vld [vmem:[%s1 + $0x30] sm:$0xf]
  %v45 = vld [vmem:[%s1 + $0x34] sm:$0xf]
  %v46 = vld [vmem:[%s1 + $0x38] sm:$0xf]
  %v47 = vld [vmem:[%s1 + $0x3c] sm:$0xf]
  %v64 = vunpack.c.l.b16 %v16
  %v65 = vunpack.c.l.b16 %v17
  %v66 = vunpack.c.l.b16 %v18
  %v67 = vunpack.c.l.b16 %v19
  %v68 = vunpack.c.l.b16 %v20
  %v69 = vunpack.c.l.b16 %v21
  %v70 = vunpack.c.l.b16 %v22
  %v71 = vunpack.c.l.b16 %v23
  %v72 = vunpack.c.l.b16 %v24
  %v73 = vunpack.c.l.b16 %v25
  %v74 = vunpack.c.l.b16 %v26
  %v75 = vunpack.c.l.b16 %v27
  %v76 = vunpack.c.l.b16 %v28
  %v77 = vunpack.c.l.b16 %v29
  %v78 = vunpack.c.l.b16 %v30
  %v79 = vunpack.c.l.b16 %v31
  %v80 = vpack.c.b16 %v65, %v64
  %v81 = vpack.c.b16 %v67, %v66
  %v82 = vpack.c.b16 %v69, %v68
  %v83 = vpack.c.b16 %v71, %v70
  %v84 = vpack.c.b16 %v73, %v72
  %v85 = vpack.c.b16 %v75, %v74
  %v86 = vpack.c.b16 %v77, %v76
  %v87 = vpack.c.b16 %v79, %v78
  %v112 = vunpack.c.l.b16 %v32
  %v113 = vunpack.c.l.b16 %v33
  %v114 = vunpack.c.l.b16 %v34
  %v115 = vunpack.c.l.b16 %v35
  %v116 = vunpack.c.l.b16 %v36
  %v117 = vunpack.c.l.b16 %v37
  %v118 = vunpack.c.l.b16 %v38
  %v119 = vunpack.c.l.b16 %v39
  %v120 = vunpack.c.l.b16 %v40
  %v121 = vunpack.c.l.b16 %v41
  %v122 = vunpack.c.l.b16 %v42
  %v123 = vunpack.c.l.b16 %v43
  %v124 = vunpack.c.l.b16 %v44
  %v125 = vunpack.c.l.b16 %v45
  %v126 = vunpack.c.l.b16 %v46
  %v127 = vunpack.c.l.b16 %v47
  %v128 = vpack.c.b16 %v113, %v112
  %v129 = vpack.c.b16 %v115, %v114
  %v130 = vpack.c.b16 %v117, %v116
  %v131 = vpack.c.b16 %v119, %v118
  %v132 = vpack.c.b16 %v121, %v120
  %v133 = vpack.c.b16 %v123, %v122
  %v134 = vpack.c.b16 %v125, %v124
  %v135 = vpack.c.b16 %v127, %v126
  %144 = vmatpush.bf16.msra.mxu0 %v135
  %145 = vmatpush.bf16.msra.mxu0 %v134
  %146 = vmatpush.bf16.msra.mxu0 %v133
  %147 = vmatpush.bf16.msra.mxu0 %v132
  %148 = vmatpush.bf16.msra.mxu0 %v131
  %149 = vmatpush.bf16.msra.mxu0 %v130
  %150 = vmatpush.bf16.msra.mxu0 %v129
  %151 = vmatpush.bf16.msra.mxu0 %v128
  %152 = vmatmul.bf16.gmra.mxu0 %v80
  %v153 = vpop.f32.mrf.mxu0
  %v154 = vadd.f32 0.0, %v153
  %v155 = vpop.f32.mrf.mxu0
  %v156 = vadd.f32 0.0, %v155
  %157 = vmatmul.bf16.gmra.mxu0 %v81
  %v158 = vpop.f32.mrf.mxu0
  %v159 = vadd.f32 0.0, %v158
  %v160 = vpop.f32.mrf.mxu0
  %v161 = vadd.f32 0.0, %v160
  %162 = vmatmul.bf16.gmra.mxu0 %v82
  %v163 = vpop.f32.mrf.mxu0
  %v164 = vadd.f32 0.0, %v163
  %v165 = vpop.f32.mrf.mxu0
  %v166 = vadd.f32 0.0, %v165
  %167 = vmatmul.bf16.gmra.mxu0 %v83
  %v168 = vpop.f32.mrf.mxu0
  %v169 = vadd.f32 0.0, %v168
  %v170 = vpop.f32.mrf.mxu0
  %v171 = vadd.f32 0.0, %v170
  %172 = vmatmul.bf16.gmra.mxu0 %v84
  %v173 = vpop.f32.mrf.mxu0
  %v174 = vadd.f32 0.0, %v173
  %v175 = vpop.f32.mrf.mxu0
  %v176 = vadd.f32 0.0, %v175
  %177 = vmatmul.bf16.gmra.mxu0 %v85
  %v178 = vpop.f32.mrf.mxu0
  %v179 = vadd.f32 0.0, %v178
  %v180 = vpop.f32.mrf.mxu0
  %v181 = vadd.f32 0.0, %v180
  %182 = vmatmul.bf16.gmra.mxu0 %v86
  %v183 = vpop.f32.mrf.mxu0
  %v184 = vadd.f32 0.0, %v183
  %v185 = vpop.f32.mrf.mxu0
  %v186 = vadd.f32 0.0, %v185
  %187 = vmatmul.bf16.gmra.mxu0 %v87
  %v188 = vpop.f32.mrf.mxu0
  %v189 = vadd.f32 0.0, %v188
  %v190 = vpop.f32.mrf.mxu0
  %v191 = vadd.f32 0.0, %v190
  %192 = vdwg.mxu0
  %v193 = vpack.c.bf16 %v154, %v154
  %v194 = vpack.c.bf16 %v156, %v156
  %v195 = vpack.c.bf16 %v159, %v159
  %v196 = vpack.c.bf16 %v161, %v161
  %v197 = vpack.c.bf16 %v164, %v164
  %v198 = vpack.c.bf16 %v166, %v166
  %v199 = vpack.c.bf16 %v169, %v169
  %v200 = vpack.c.bf16 %v171, %v171
  %v201 = vpack.c.bf16 %v174, %v174
  %v202 = vpack.c.bf16 %v176, %v176
  %v203 = vpack.c.bf16 %v179, %v179
  %v204 = vpack.c.bf16 %v181, %v181
  %v205 = vpack.c.bf16 %v184, %v184
  %v206 = vpack.c.bf16 %v186, %v186
  %v207 = vpack.c.bf16 %v189, %v189
  %v208 = vpack.c.bf16 %v191, %v191
  %209 = vst [vmem:[%s3] sm:$0xf] %v193
  %210 = vst [vmem:[%s3 + $0x4] sm:$0xf] %v194
  %211 = vst [vmem:[%s3 + $0x8] sm:$0xf] %v195
  %212 = vst [vmem:[%s3 + $0xc] sm:$0xf] %v196
  %213 = vst [vmem:[%s3 + $0x10] sm:$0xf] %v197
  %214 = vst [vmem:[%s3 + $0x14] sm:$0xf] %v198
  %215 = vst [vmem:[%s3 + $0x18] sm:$0xf] %v199
  %216 = vst [vmem:[%s3 + $0x1c] sm:$0xf] %v200
  %217 = vst [vmem:[%s3 + $0x20] sm:$0xf] %v201
  %218 = vst [vmem:[%s3 + $0x24] sm:$0xf] %v202
  %219 = vst [vmem:[%s3 + $0x28] sm:$0xf] %v203
  %220 = vst [vmem:[%s3 + $0x2c] sm:$0xf] %v204
  %221 = vst [vmem:[%s3 + $0x30] sm:$0xf] %v205
  %222 = vst [vmem:[%s3 + $0x34] sm:$0xf] %v206
  %223 = vst [vmem:[%s3 + $0x38] sm:$0xf] %v207
  %224 = vst [vmem:[%s3 + $0x3c] sm:$0xf] %v208
  %v225 = vld [vmem:[%s2] sm:$0xf]
  %v226 = vld [vmem:[%s2 + $0x4] sm:$0xf]
  %v227 = vld [vmem:[%s2 + $0x8] sm:$0xf]
  %v228 = vld [vmem:[%s2 + $0xc] sm:$0xf]
  %v229 = vld [vmem:[%s2 + $0x10] sm:$0xf]
  %v230 = vld [vmem:[%s2 + $0x14] sm:$0xf]
  %v231 = vld [vmem:[%s2 + $0x18] sm:$0xf]
  %v232 = vld [vmem:[%s2 + $0x1c] sm:$0xf]
  %v233 = vld [vmem:[%s2 + $0x20] sm:$0xf]
  %v234 = vld [vmem:[%s2 + $0x24] sm:$0xf]
  %v235 = vld [vmem:[%s2 + $0x28] sm:$0xf]
  %v236 = vld [vmem:[%s2 + $0x2c] sm:$0xf]
  %v237 = vld [vmem:[%s2 + $0x30] sm:$0xf]
  %v238 = vld [vmem:[%s2 + $0x34] sm:$0xf]
  %v239 = vld [vmem:[%s2 + $0x38] sm:$0xf]
  %v240 = vld [vmem:[%s2 + $0x3c] sm:$0xf]
  %v257 = vunpack.c.l.b16 %v225
  %v258 = vunpack.c.l.b16 %v226
  %v259 = vunpack.c.l.b16 %v227
  %v260 = vunpack.c.l.b16 %v228
  %v261 = vunpack.c.l.b16 %v229
  %v262 = vunpack.c.l.b16 %v230
  %v263 = vunpack.c.l.b16 %v231
  %v264 = vunpack.c.l.b16 %v232
  %v265 = vunpack.c.l.b16 %v233
  %v266 = vunpack.c.l.b16 %v234
  %v267 = vunpack.c.l.b16 %v235
  %v268 = vunpack.c.l.b16 %v236
  %v269 = vunpack.c.l.b16 %v237
  %v270 = vunpack.c.l.b16 %v238
  %v271 = vunpack.c.l.b16 %v239
  %v272 = vunpack.c.l.b16 %v240
  %v273 = vpack.c.b16 %v258, %v257
  %v274 = vpack.c.b16 %v260, %v259
  %v275 = vpack.c.b16 %v262, %v261
  %v276 = vpack.c.b16 %v264, %v263
  %v277 = vpack.c.b16 %v266, %v265
  %v278 = vpack.c.b16 %v268, %v267
  %v279 = vpack.c.b16 %v270, %v269
  %v280 = vpack.c.b16 %v272, %v271
  %289 = vmatpush.bf16.msra.mxu0 %v280
  %290 = vmatpush.bf16.msra.mxu0 %v279
  %291 = vmatpush.bf16.msra.mxu0 %v278
  %292 = vmatpush.bf16.msra.mxu0 %v277
  %293 = vmatpush.bf16.msra.mxu0 %v276
  %294 = vmatpush.bf16.msra.mxu0 %v275
  %295 = vmatpush.bf16.msra.mxu0 %v274
  %296 = vmatpush.bf16.msra.mxu0 %v273
  %297 = vmatmul.bf16.gmra.mxu0 %v80
  %v298 = vpop.f32.mrf.mxu0
  %v299 = vadd.f32 0.0, %v298
  %v300 = vpop.f32.mrf.mxu0
  %v301 = vadd.f32 0.0, %v300
  %302 = vmatmul.bf16.gmra.mxu0 %v81
  %v303 = vpop.f32.mrf.mxu0
  %v304 = vadd.f32 0.0, %v303
  %v305 = vpop.f32.mrf.mxu0
  %v306 = vadd.f32 0.0, %v305
  %307 = vmatmul.bf16.gmra.mxu0 %v82
  %v308 = vpop.f32.mrf.mxu0
  %v309 = vadd.f32 0.0, %v308
  %v310 = vpop.f32.mrf.mxu0
  %v311 = vadd.f32 0.0, %v310
  %312 = vmatmul.bf16.gmra.mxu0 %v83
  %v313 = vpop.f32.mrf.mxu0
  %v314 = vadd.f32 0.0, %v313
  %v315 = vpop.f32.mrf.mxu0
  %v316 = vadd.f32 0.0, %v315
  %317 = vmatmul.bf16.gmra.mxu0 %v84
  %v318 = vpop.f32.mrf.mxu0
  %v319 = vadd.f32 0.0, %v318
  %v320 = vpop.f32.mrf.mxu0
  %v321 = vadd.f32 0.0, %v320
  %322 = vmatmul.bf16.gmra.mxu0 %v85
  %v323 = vpop.f32.mrf.mxu0
  %v324 = vadd.f32 0.0, %v323
  %v325 = vpop.f32.mrf.mxu0
  %v326 = vadd.f32 0.0, %v325
  %327 = vmatmul.bf16.gmra.mxu0 %v86
  %v328 = vpop.f32.mrf.mxu0
  %v329 = vadd.f32 0.0, %v328
  %v330 = vpop.f32.mrf.mxu0
  %v331 = vadd.f32 0.0, %v330
  %332 = vmatmul.bf16.gmra.mxu0 %v87
  %v333 = vpop.f32.mrf.mxu0
  %v334 = vadd.f32 0.0, %v333
  %v335 = vpop.f32.mrf.mxu0
  %v336 = vadd.f32 0.0, %v335
  %337 = vdwg.mxu0
  %338 = vst [vmem:[%s4] sm:$0xff] %v299
  %339 = vst [vmem:[%s4 + $0x8] sm:$0xff] %v301
  %340 = vst [vmem:[%s4 + $0x10] sm:$0xff] %v304
  %341 = vst [vmem:[%s4 + $0x18] sm:$0xff] %v306
  %342 = vst [vmem:[%s4 + $0x20] sm:$0xff] %v309
  %343 = vst [vmem:[%s4 + $0x28] sm:$0xff] %v311
  %344 = vst [vmem:[%s4 + $0x30] sm:$0xff] %v314
  %345 = vst [vmem:[%s4 + $0x38] sm:$0xff] %v316
  %346 = vst [vmem:[%s4 + $0x40] sm:$0xff] %v319
  %347 = vst [vmem:[%s4 + $0x48] sm:$0xff] %v321
  %348 = vst [vmem:[%s4 + $0x50] sm:$0xff] %v324
  %349 = vst [vmem:[%s4 + $0x58] sm:$0xff] %v326
  %350 = vst [vmem:[%s4 + $0x60] sm:$0xff] %v329
  %351 = vst [vmem:[%s4 + $0x68] sm:$0xff] %v331
  %352 = vst [vmem:[%s4 + $0x70] sm:$0xff] %v334
  %353 = vst [vmem:[%s4 + $0x78] sm:$0xff] %v336
  // Predicated region
  $region14: #{_lambda_.6} parent=0 // pred_check
    _
  $region15: #{_lambda_.6} parent=0 // pred_check_branch
    %355 = sbr.rel (0) target = $region17
  $region16: #{_lambda_.6} parent=0 // pred_region
    _
  $region17: #{_lambda_.6} parent=0 // pred_fallthru
    _
  // Predicated region
  $region18: #{_lambda_.6} parent=0 // pred_check
    _
  $region19: #{_lambda_.6} parent=0 // pred_check_branch
    %357 = sbr.rel (0) target = $region21
  $region20: #{_lambda_.6} parent=0 // pred_region
    _
  $region21: #{_lambda_.6} parent=0 // pred_fallthru
    _
  // Predicated region
  $region22: #{_lambda_.6} parent=0 // pred_check
    _
  $region23: #{_lambda_.6} parent=0 // pred_check_branch
    %359 = sbr.rel (0) target = $region25
  $region24: #{_lambda_.6} parent=0 // pred_region
    _
  $region25: #{_lambda_.6} parent=0 // pred_fallthru
    _
  // Predicated region
  $region26: #{_lambda_.6} parent=0 // pred_check
    _
  $region27: #{_lambda_.6} parent=0 // pred_check_branch
    %361 = sbr.rel (0) target = $region29
  $region28: #{_lambda_.6} parent=0 // pred_region
    _
  $region29: #{_lambda_.6} parent=0 // pred_fallthru
    _

// kernel: _lambda_.7
$region0: #{_lambda_.7}
  #allocation0 [shape = 'u32[]', space=smem, size = 0x4, offset = 0x4, fixed_abs, tag = 'smem constant byte address 0x4 - core index']
  #allocation1 [shape = 'u32[72,128]{1,0:T(1,128)}', space=vmem, size = 0x9000, scoped, tag = 'internal scratch']
  %s0 = inlined_call_operand.vmem [shape: f32[128,128], index: 0, kind: input, shape index: {}]
  %s1 = inlined_call_operand.vmem [shape: f32[1,128], index: 1, kind: input, shape index: {}]
  %s2 = inlined_call_operand.vmem [shape: bf16[128,128], index: 2, kind: input, shape index: {}]
  %s3 = inlined_call_operand.vmem [shape: bf16[128,128], index: 3, kind: input, shape index: {}]
  %s4 = inlined_call_operand.vmem [shape: f32[128,128], index: 4, kind: output, shape index: {}]
  %s5 = sld [smem:[#allocation0]]
  $region26: #{_lambda_.7} parent=0
    _
  %s7 = ssub.s32 1, %s5
  %s8 = scalar_select 0, %s7, %s5
  // Predicated region
  $region2: #{_lambda_.7} parent=0 // pred_check
    _
  $region3: #{_lambda_.7} parent=0 // pred_check_branch
    %10 = sbr.rel (0) target = $region5
  $region4: #{_lambda_.7} parent=0 // pred_region
    _
  $region5: #{_lambda_.7} parent=0 // pred_fallthru
    _
  // Predicated region
  $region6: #{_lambda_.7} parent=0 // pred_check
    _
  $region7: #{_lambda_.7} parent=0 // pred_check_branch
    %12 = sbr.rel (0) target = $region9
  $region8: #{_lambda_.7} parent=0 // pred_region
    _
  $region9: #{_lambda_.7} parent=0 // pred_fallthru
    _
  // Predicated region
  $region10: #{_lambda_.7} parent=0 // pred_check
    _
  $region11: #{_lambda_.7} parent=0 // pred_check_branch
    %14 = sbr.rel (0) target = $region13
  $region12: #{_lambda_.7} parent=0 // pred_region
    _
  $region13: #{_lambda_.7} parent=0 // pred_fallthru
    _
  // Predicated region
  $region14: #{_lambda_.7} parent=0 // pred_check
    _
  $region15: #{_lambda_.7} parent=0 // pred_check_branch
    %16 = sbr.rel (0) target = $region17
  $region16: #{_lambda_.7} parent=0 // pred_region
    _
  $region17: #{_lambda_.7} parent=0 // pred_fallthru
    _
  %v17 = vld [vmem:[%s0] sm:$0xff]
  %v18 = vld [vmem:[%s0 + $0x8] sm:$0xff]
  %v19 = vld [vmem:[%s0 + $0x10] sm:$0xff]
  %v20 = vld [vmem:[%s0 + $0x18] sm:$0xff]
  %v21 = vld [vmem:[%s0 + $0x20] sm:$0xff]
  %v22 = vld [vmem:[%s0 + $0x28] sm:$0xff]
  %v23 = vld [vmem:[%s0 + $0x30] sm:$0xff]
  %v24 = vld [vmem:[%s0 + $0x38] sm:$0xff]
  %v25 = vld [vmem:[%s0 + $0x40] sm:$0xff]
  %v26 = vld [vmem:[%s0 + $0x48] sm:$0xff]
  %v27 = vld [vmem:[%s0 + $0x50] sm:$0xff]
  %v28 = vld [vmem:[%s0 + $0x58] sm:$0xff]
  %v29 = vld [vmem:[%s0 + $0x60] sm:$0xff]
  %v30 = vld [vmem:[%s0 + $0x68] sm:$0xff]
  %v31 = vld [vmem:[%s0 + $0x70] sm:$0xff]
  %v32 = vld [vmem:[%s0 + $0x78] sm:$0xff]
  %v33 = vld [vmem:[%s1] sm:$0x1]
  %35 = vset.pattern.permute.xlu0 0
  %36 = vperm.xlu0 %35, %v17
  %v37 = vpop.permute.xlu0 %36
  %40 = vset.pattern.permute.xlu0 0
  %41 = vperm.xlu0 %40, %v18
  %v42 = vpop.permute.xlu0 %41
  %45 = vset.pattern.permute.xlu0 0
  %46 = vperm.xlu0 %45, %v19
  %v47 = vpop.permute.xlu0 %46
  %50 = vset.pattern.permute.xlu0 0
  %51 = vperm.xlu0 %50, %v20
  %v52 = vpop.permute.xlu0 %51
  %55 = vset.pattern.permute.xlu0 0
  %56 = vperm.xlu0 %55, %v21
  %v57 = vpop.permute.xlu0 %56
  %60 = vset.pattern.permute.xlu0 0
  %61 = vperm.xlu0 %60, %v22
  %v62 = vpop.permute.xlu0 %61
  %65 = vset.pattern.permute.xlu0 0
  %66 = vperm.xlu0 %65, %v23
  %v67 = vpop.permute.xlu0 %66
  %70 = vset.pattern.permute.xlu0 0
  %71 = vperm.xlu0 %70, %v24
  %v72 = vpop.permute.xlu0 %71
  %75 = vset.pattern.permute.xlu0 0
  %76 = vperm.xlu0 %75, %v25
  %v77 = vpop.permute.xlu0 %76
  %80 = vset.pattern.permute.xlu0 0
  %81 = vperm.xlu0 %80, %v26
  %v82 = vpop.permute.xlu0 %81
  %85 = vset.pattern.permute.xlu0 0
  %86 = vperm.xlu0 %85, %v27
  %v87 = vpop.permute.xlu0 %86
  %90 = vset.pattern.permute.xlu0 0
  %91 = vperm.xlu0 %90, %v28
  %v92 = vpop.permute.xlu0 %91
  %95 = vset.pattern.permute.xlu0 0
  %96 = vperm.xlu0 %95, %v29
  %v97 = vpop.permute.xlu0 %96
  %100 = vset.pattern.permute.xlu0 0
  %101 = vperm.xlu0 %100, %v30
  %v102 = vpop.permute.xlu0 %101
  %105 = vset.pattern.permute.xlu0 0
  %106 = vperm.xlu0 %105, %v31
  %v107 = vpop.permute.xlu0 %106
  %110 = vset.pattern.permute.xlu0 0
  %111 = vperm.xlu0 %110, %v32
  %v112 = vpop.permute.xlu0 %111
  %v115 = vperm.slane %v33, 0
  %v117 = vadd.f32 %v37, %v115
  %v118 = vadd.f32 %v42, %v115
  %v119 = vadd.f32 %v47, %v115
  %v120 = vadd.f32 %v52, %v115
  %v121 = vadd.f32 %v57, %v115
  %v122 = vadd.f32 %v62, %v115
  %v123 = vadd.f32 %v67, %v115
  %v124 = vadd.f32 %v72, %v115
  %v125 = vadd.f32 %v77, %v115
  %v126 = vadd.f32 %v82, %v115
  %v127 = vadd.f32 %v87, %v115
  %v128 = vadd.f32 %v92, %v115
  %v129 = vadd.f32 %v97, %v115
  %v130 = vadd.f32 %v102, %v115
  %v131 = vadd.f32 %v107, %v115
  %v132 = vadd.f32 %v112, %v115
  %vm133 = vcmp.gt.f32.partialorder %v117, 0.0
  %vm134 = vcmp.gt.f32.partialorder %v118, 0.0
  %vm135 = vcmp.gt.f32.partialorder %v119, 0.0
  %vm136 = vcmp.gt.f32.partialorder %v120, 0.0
  %vm137 = vcmp.gt.f32.partialorder %v121, 0.0
  %vm138 = vcmp.gt.f32.partialorder %v122, 0.0
  %vm139 = vcmp.gt.f32.partialorder %v123, 0.0
  %vm140 = vcmp.gt.f32.partialorder %v124, 0.0
  %vm141 = vcmp.gt.f32.partialorder %v125, 0.0
  %vm142 = vcmp.gt.f32.partialorder %v126, 0.0
  %vm143 = vcmp.gt.f32.partialorder %v127, 0.0
  %vm144 = vcmp.gt.f32.partialorder %v128, 0.0
  %vm145 = vcmp.gt.f32.partialorder %v129, 0.0
  %vm146 = vcmp.gt.f32.partialorder %v130, 0.0
  %vm147 = vcmp.gt.f32.partialorder %v131, 0.0
  %vm148 = vcmp.gt.f32.partialorder %v132, 0.0
  %v149 = vmul.f32 %v117, 0.2
  %v150 = vmul.f32 %v118, 0.2
  %v151 = vmul.f32 %v119, 0.2
  %v152 = vmul.f32 %v120, 0.2
  %v153 = vmul.f32 %v121, 0.2
  %v154 = vmul.f32 %v122, 0.2
  %v155 = vmul.f32 %v123, 0.2
  %v156 = vmul.f32 %v124, 0.2
  %v157 = vmul.f32 %v125, 0.2
  %v158 = vmul.f32 %v126, 0.2
  %v159 = vmul.f32 %v127, 0.2
  %v160 = vmul.f32 %v128, 0.2
  %v161 = vmul.f32 %v129, 0.2
  %v162 = vmul.f32 %v130, 0.2
  %v163 = vmul.f32 %v131, 0.2
  %v164 = vmul.f32 %v132, 0.2
  %v165 = vsel %vm133, %v117, %v149
  %v166 = vsel %vm134, %v118, %v150
  %v167 = vsel %vm135, %v119, %v151
  %v168 = vsel %vm136, %v120, %v152
  %v169 = vsel %vm137, %v121, %v153
  %v170 = vsel %vm138, %v122, %v154
  %v171 = vsel %vm139, %v123, %v155
  %v172 = vsel %vm140, %v124, %v156
  %v173 = vsel %vm141, %v125, %v157
  %v174 = vsel %vm142, %v126, %v158
  %v175 = vsel %vm143, %v127, %v159
  %v176 = vsel %vm144, %v128, %v160
  %v177 = vsel %vm145, %v129, %v161
  %v178 = vsel %vm146, %v130, %v162
  %v179 = vsel %vm147, %v131, %v163
  %v180 = vsel %vm148, %v132, %v164
  %v181 = vld [vmem:[%s2] sm:$0xf]
  %v182 = vld [vmem:[%s2 + $0x4] sm:$0xf]
  %v183 = vld [vmem:[%s2 + $0x8] sm:$0xf]
  %v184 = vld [vmem:[%s2 + $0xc] sm:$0xf]
  %v185 = vld [vmem:[%s2 + $0x10] sm:$0xf]
  %v186 = vld [vmem:[%s2 + $0x14] sm:$0xf]
  %v187 = vld [vmem:[%s2 + $0x18] sm:$0xf]
  %v188 = vld [vmem:[%s2 + $0x1c] sm:$0xf]
  %v189 = vld [vmem:[%s2 + $0x20] sm:$0xf]
  %v190 = vld [vmem:[%s2 + $0x24] sm:$0xf]
  %v191 = vld [vmem:[%s2 + $0x28] sm:$0xf]
  %v192 = vld [vmem:[%s2 + $0x2c] sm:$0xf]
  %v193 = vld [vmem:[%s2 + $0x30] sm:$0xf]
  %v194 = vld [vmem:[%s2 + $0x34] sm:$0xf]
  %v195 = vld [vmem:[%s2 + $0x38] sm:$0xf]
  %v196 = vld [vmem:[%s2 + $0x3c] sm:$0xf]
  %v197 = vunpack.c.l.bf16 %v181
  %v198 = vunpack.c.l.bf16 %v182
  %v199 = vunpack.c.l.bf16 %v183
  %v200 = vunpack.c.l.bf16 %v184
  %v201 = vunpack.c.l.bf16 %v185
  %v202 = vunpack.c.l.bf16 %v186
  %v203 = vunpack.c.l.bf16 %v187
  %v204 = vunpack.c.l.bf16 %v188
  %v205 = vunpack.c.l.bf16 %v189
  %v206 = vunpack.c.l.bf16 %v190
  %v207 = vunpack.c.l.bf16 %v191
  %v208 = vunpack.c.l.bf16 %v192
  %v209 = vunpack.c.l.bf16 %v193
  %v210 = vunpack.c.l.bf16 %v194
  %v211 = vunpack.c.l.bf16 %v195
  %v212 = vunpack.c.l.bf16 %v196
  %v213 = vadd.f32 %v165, %v197
  %v214 = vadd.f32 %v166, %v198
  %v215 = vadd.f32 %v167, %v199
  %v216 = vadd.f32 %v168, %v200
  %v217 = vadd.f32 %v169, %v201
  %v218 = vadd.f32 %v170, %v202
  %v219 = vadd.f32 %v171, %v203
  %v220 = vadd.f32 %v172, %v204
  %v221 = vadd.f32 %v173, %v205
  %v222 = vadd.f32 %v174, %v206
  %v223 = vadd.f32 %v175, %v207
  %v224 = vadd.f32 %v176, %v208
  %v225 = vadd.f32 %v177, %v209
  %v226 = vadd.f32 %v178, %v210
  %v227 = vadd.f32 %v179, %v211
  %v228 = vadd.f32 %v180, %v212
  %229 = vmax.xlane.f32.xlu0 %v213
  %v230 = vpop.xlane.xlu0 %229
  %231 = vmax.xlane.f32.xlu0 %v214
  %v232 = vpop.xlane.xlu0 %231
  %233 = vmax.xlane.f32.xlu0 %v215
  %v234 = vpop.xlane.xlu0 %233
  %235 = vmax.xlane.f32.xlu0 %v216
  %v236 = vpop.xlane.xlu0 %235
  %237 = vmax.xlane.f32.xlu0 %v217
  %v238 = vpop.xlane.xlu0 %237
  %239 = vmax.xlane.f32.xlu0 %v218
  %v240 = vpop.xlane.xlu0 %239
  %241 = vmax.xlane.f32.xlu0 %v219
  %v242 = vpop.xlane.xlu0 %241
  %243 = vmax.xlane.f32.xlu0 %v220
  %v244 = vpop.xlane.xlu0 %243
  %245 = vmax.xlane.f32.xlu0 %v221
  %v246 = vpop.xlane.xlu0 %245
  %247 = vmax.xlane.f32.xlu0 %v222
  %v248 = vpop.xlane.xlu0 %247
  %249 = vmax.xlane.f32.xlu0 %v223
  %v250 = vpop.xlane.xlu0 %249
  %251 = vmax.xlane.f32.xlu0 %v224
  %v252 = vpop.xlane.xlu0 %251
  %253 = vmax.xlane.f32.xlu0 %v225
  %v254 = vpop.xlane.xlu0 %253
  %255 = vmax.xlane.f32.xlu0 %v226
  %v256 = vpop.xlane.xlu0 %255
  %257 = vmax.xlane.f32.xlu0 %v227
  %v258 = vpop.xlane.xlu0 %257
  %259 = vmax.xlane.f32.xlu0 %v228
  %v260 = vpop.xlane.xlu0 %259
  %v261 = vsub.f32 %v213, %v230
  %v262 = vsub.f32 %v214, %v232
  %v263 = vsub.f32 %v215, %v234
  %v264 = vsub.f32 %v216, %v236
  %v265 = vsub.f32 %v217, %v238
  %v266 = vsub.f32 %v218, %v240
  %v267 = vsub.f32 %v219, %v242
  %v268 = vsub.f32 %v220, %v244
  %v269 = vsub.f32 %v221, %v246
  %v270 = vsub.f32 %v222, %v248
  %v271 = vsub.f32 %v223, %v250
  %v272 = vsub.f32 %v224, %v252
  %v273 = vsub.f32 %v225, %v254
  %v274 = vsub.f32 %v226, %v256
  %v275 = vsub.f32 %v227, %v258
  %v276 = vsub.f32 %v228, %v260
  %v277 = vmul.f32 %v261, 1.442695
  %v278 = vpow.pop %v277
  %v279 = vmul.f32 %v262, 1.442695
  %v280 = vpow.pop %v279
  %v281 = vmul.f32 %v263, 1.442695
  %v282 = vpow.pop %v281
  %v283 = vmul.f32 %v264, 1.442695
  %v284 = vpow.pop %v283
  %v285 = vmul.f32 %v265, 1.442695
  %v286 = vpow.pop %v285
  %v287 = vmul.f32 %v266, 1.442695
  %v288 = vpow.pop %v287
  %v289 = vmul.f32 %v267, 1.442695
  %v290 = vpow.pop %v289
  %v291 = vmul.f32 %v268, 1.442695
  %v292 = vpow.pop %v291
  %v293 = vmul.f32 %v269, 1.442695
  %v294 = vpow.pop %v293
  %v295 = vmul.f32 %v270, 1.442695
  %v296 = vpow.pop %v295
  %v297 = vmul.f32 %v271, 1.442695
  %v298 = vpow.pop %v297
  %v299 = vmul.f32 %v272, 1.442695
  %v300 = vpow.pop %v299
  %v301 = vmul.f32 %v273, 1.442695
  %v302 = vpow.pop %v301
  %v303 = vmul.f32 %v274, 1.442695
  %v304 = vpow.pop %v303
  %v305 = vmul.f32 %v275, 1.442695
  %v306 = vpow.pop %v305
  %v307 = vmul.f32 %v276, 1.442695
  %v308 = vpow.pop %v307
  %309 = vadd.xlane.f32.xlu0 %v278
  %v310 = vpop.xlane.xlu0 %309
  %311 = vadd.xlane.f32.xlu0 %v280
  %v312 = vpop.xlane.xlu0 %311
  %313 = vadd.xlane.f32.xlu0 %v282
  %v314 = vpop.xlane.xlu0 %313
  %315 = vadd.xlane.f32.xlu0 %v284
  %v316 = vpop.xlane.xlu0 %315
  %317 = vadd.xlane.f32.xlu0 %v286
  %v318 = vpop.xlane.xlu0 %317
  %319 = vadd.xlane.f32.xlu0 %v288
  %v320 = vpop.xlane.xlu0 %319
  %321 = vadd.xlane.f32.xlu0 %v290
  %v322 = vpop.xlane.xlu0 %321
  %323 = vadd.xlane.f32.xlu0 %v292
  %v324 = vpop.xlane.xlu0 %323
  %325 = vadd.xlane.f32.xlu0 %v294
  %v326 = vpop.xlane.xlu0 %325
  %327 = vadd.xlane.f32.xlu0 %v296
  %v328 = vpop.xlane.xlu0 %327
  %329 = vadd.xlane.f32.xlu0 %v298
  %v330 = vpop.xlane.xlu0 %329
  %331 = vadd.xlane.f32.xlu0 %v300
  %v332 = vpop.xlane.xlu0 %331
  %333 = vadd.xlane.f32.xlu0 %v302
  %v334 = vpop.xlane.xlu0 %333
  %335 = vadd.xlane.f32.xlu0 %v304
  %v336 = vpop.xlane.xlu0 %335
  %337 = vadd.xlane.f32.xlu0 %v306
  %v338 = vpop.xlane.xlu0 %337
  %339 = vadd.xlane.f32.xlu0 %v308
  %v340 = vpop.xlane.xlu0 %339
  %v341 = vrcp.pop %v310
  %v342 = vmul.f32 %v310, %v341
  %v343 = vsub.f32 1.0, %v342
  %v344 = vmul.f32 %v341, %v343
  %v345 = vadd.f32 %v341, %v344
  %vm346 = vweird.f32 %v310
  %vm347 = vweird.f32 %v341
  %vm348 = vmor %vm346, %vm347
  %v349 = vsel %vm348, %v341, %v345
  %v350 = vand.u32 2147483647, %v310
  %vm351 = vcmp.eq.f32.partialorder %v350, 8.507059e+37
  %v352 = vand.u32 %v310, 2147483648
  %v353 = vor.u32 1.1754944e-38, %v352
  %v354 = vsel %vm351, %v353, %v349
  %v355 = vmul.f32 1.0, %v354
  %v356 = vrcp.pop %v312
  %v357 = vmul.f32 %v312, %v356
  %v358 = vsub.f32 1.0, %v357
  %v359 = vmul.f32 %v356, %v358
  %v360 = vadd.f32 %v356, %v359
  %vm361 = vweird.f32 %v312
  %vm362 = vweird.f32 %v356
  %vm363 = vmor %vm361, %vm362
  %v364 = vsel %vm363, %v356, %v360
  %v365 = vand.u32 2147483647, %v312
  %vm366 = vcmp.eq.f32.partialorder %v365, 8.507059e+37
  %v367 = vand.u32 %v312, 2147483648
  %v368 = vor.u32 1.1754944e-38, %v367
  %v369 = vsel %vm366, %v368, %v364
  %v370 = vmul.f32 1.0, %v369
  %v371 = vrcp.pop %v314
  %v372 = vmul.f32 %v314, %v371
  %v373 = vsub.f32 1.0, %v372
  %v374 = vmul.f32 %v371, %v373
  %v375 = vadd.f32 %v371, %v374
  %vm376 = vweird.f32 %v314
  %vm377 = vweird.f32 %v371
  %vm378 = vmor %vm376, %vm377
  %v379 = vsel %vm378, %v371, %v375
  %v380 = vand.u32 2147483647, %v314
  %vm381 = vcmp.eq.f32.partialorder %v380, 8.507059e+37
  %v382 = vand.u32 %v314, 2147483648
  %v383 = vor.u32 1.1754944e-38, %v382
  %v384 = vsel %vm381, %v383, %v379
  %v385 = vmul.f32 1.0, %v384
  %v386 = vrcp.pop %v316
  %v387 = vmul.f32 %v316, %v386
  %v388 = vsub.f32 1.0, %v387
  %v389 = vmul.f32 %v386, %v388
  %v390 = vadd.f32 %v386, %v389
  %vm391 = vweird.f32 %v316
  %vm392 = vweird.f32 %v386
  %vm393 = vmor %vm391, %vm392
  %v394 = vsel %vm393, %v386, %v390
  %v395 = vand.u32 2147483647, %v316
  %vm396 = vcmp.eq.f32.partialorder %v395, 8.507059e+37
  %v397 = vand.u32 %v316, 2147483648
  %v398 = vor.u32 1.1754944e-38, %v397
  %v399 = vsel %vm396, %v398, %v394
  %v400 = vmul.f32 1.0, %v399
  %v401 = vrcp.pop %v318
  %v402 = vmul.f32 %v318, %v401
  %v403 = vsub.f32 1.0, %v402
  %v404 = vmul.f32 %v401, %v403
  %v405 = vadd.f32 %v401, %v404
  %vm406 = vweird.f32 %v318
  %vm407 = vweird.f32 %v401
  %vm408 = vmor %vm406, %vm407
  %v409 = vsel %vm408, %v401, %v405
  %v410 = vand.u32 2147483647, %v318
  %vm411 = vcmp.eq.f32.partialorder %v410, 8.507059e+37
  %v412 = vand.u32 %v318, 2147483648
  %v413 = vor.u32 1.1754944e-38, %v412
  %v414 = vsel %vm411, %v413, %v409
  %v415 = vmul.f32 1.0, %v414
  %v416 = vrcp.pop %v320
  %v417 = vmul.f32 %v320, %v416
  %v418 = vsub.f32 1.0, %v417
  %v419 = vmul.f32 %v416, %v418
  %v420 = vadd.f32 %v416, %v419
  %vm421 = vweird.f32 %v320
  %vm422 = vweird.f32 %v416
  %vm423 = vmor %vm421, %vm422
  %v424 = vsel %vm423, %v416, %v420
  %v425 = vand.u32 2147483647, %v320
  %vm426 = vcmp.eq.f32.partialorder %v425, 8.507059e+37
  %v427 = vand.u32 %v320, 2147483648
  %v428 = vor.u32 1.1754944e-38, %v427
  %v429 = vsel %vm426, %v428, %v424
  %v430 = vmul.f32 1.0, %v429
  %v431 = vrcp.pop %v322
  %v432 = vmul.f32 %v322, %v431
  %v433 = vsub.f32 1.0, %v432
  %v434 = vmul.f32 %v431, %v433
  %v435 = vadd.f32 %v431, %v434
  %vm436 = vweird.f32 %v322
  %vm437 = vweird.f32 %v431
  %vm438 = vmor %vm436, %vm437
  %v439 = vsel %vm438, %v431, %v435
  %v440 = vand.u32 2147483647, %v322
  %vm441 = vcmp.eq.f32.partialorder %v440, 8.507059e+37
  %v442 = vand.u32 %v322, 2147483648
  %v443 = vor.u32 1.1754944e-38, %v442
  %v444 = vsel %vm441, %v443, %v439
  %v445 = vmul.f32 1.0, %v444
  %v446 = vrcp.pop %v324
  %v447 = vmul.f32 %v324, %v446
  %v448 = vsub.f32 1.0, %v447
  %v449 = vmul.f32 %v446, %v448
  %v450 = vadd.f32 %v446, %v449
  %vm451 = vweird.f32 %v324
  %vm452 = vweird.f32 %v446
  %vm453 = vmor %vm451, %vm452
  %v454 = vsel %vm453, %v446, %v450
  %v455 = vand.u32 2147483647, %v324
  %vm456 = vcmp.eq.f32.partialorder %v455, 8.507059e+37
  %v457 = vand.u32 %v324, 2147483648
  %v458 = vor.u32 1.1754944e-38, %v457
  %v459 = vsel %vm456, %v458, %v454
  %v460 = vmul.f32 1.0, %v459
  %v461 = vrcp.pop %v326
  %v462 = vmul.f32 %v326, %v461
  %v463 = vsub.f32 1.0, %v462
  %v464 = vmul.f32 %v461, %v463
  %v465 = vadd.f32 %v461, %v464
  %vm466 = vweird.f32 %v326
  %vm467 = vweird.f32 %v461
  %vm468 = vmor %vm466, %vm467
  %v469 = vsel %vm468, %v461, %v465
  %v470 = vand.u32 2147483647, %v326
  %vm471 = vcmp.eq.f32.partialorder %v470, 8.507059e+37
  %v472 = vand.u32 %v326, 2147483648
  %v473 = vor.u32 1.1754944e-38, %v472
  %v474 = vsel %vm471, %v473, %v469
  %v475 = vmul.f32 1.0, %v474
  %v476 = vrcp.pop %v328
  %v477 = vmul.f32 %v328, %v476
  %v478 = vsub.f32 1.0, %v477
  %v479 = vmul.f32 %v476, %v478
  %v480 = vadd.f32 %v476, %v479
  %vm481 = vweird.f32 %v328
  %vm482 = vweird.f32 %v476
  %vm483 = vmor %vm481, %vm482
  %v484 = vsel %vm483, %v476, %v480
  %v485 = vand.u32 2147483647, %v328
  %vm486 = vcmp.eq.f32.partialorder %v485, 8.507059e+37
  %v487 = vand.u32 %v328, 2147483648
  %v488 = vor.u32 1.1754944e-38, %v487
  %v489 = vsel %vm486, %v488, %v484
  %v490 = vmul.f32 1.0, %v489
  %v491 = vrcp.pop %v330
  %v492 = vmul.f32 %v330, %v491
  %v493 = vsub.f32 1.0, %v492
  %v494 = vmul.f32 %v491, %v493
  %v495 = vadd.f32 %v491, %v494
  %vm496 = vweird.f32 %v330
  %vm497 = vweird.f32 %v491
  %vm498 = vmor %vm496, %vm497
  %v499 = vsel %vm498, %v491, %v495
  %v500 = vand.u32 2147483647, %v330
  %vm501 = vcmp.eq.f32.partialorder %v500, 8.507059e+37
  %v502 = vand.u32 %v330, 2147483648
  %v503 = vor.u32 1.1754944e-38, %v502
  %v504 = vsel %vm501, %v503, %v499
  %v505 = vmul.f32 1.0, %v504
  %v506 = vrcp.pop %v332
  %v507 = vmul.f32 %v332, %v506
  %v508 = vsub.f32 1.0, %v507
  %v509 = vmul.f32 %v506, %v508
  %v510 = vadd.f32 %v506, %v509
  %vm511 = vweird.f32 %v332
  %vm512 = vweird.f32 %v506
  %vm513 = vmor %vm511, %vm512
  %v514 = vsel %vm513, %v506, %v510
  %v515 = vand.u32 2147483647, %v332
  %vm516 = vcmp.eq.f32.partialorder %v515, 8.507059e+37
  %v517 = vand.u32 %v332, 2147483648
  %v518 = vor.u32 1.1754944e-38, %v517
  %v519 = vsel %vm516, %v518, %v514
  %v520 = vmul.f32 1.0, %v519
  %v521 = vrcp.pop %v334
  %v522 = vmul.f32 %v334, %v521
  %v523 = vsub.f32 1.0, %v522
  %v524 = vmul.f32 %v521, %v523
  %v525 = vadd.f32 %v521, %v524
  %vm526 = vweird.f32 %v334
  %vm527 = vweird.f32 %v521
  %vm528 = vmor %vm526, %vm527
  %v529 = vsel %vm528, %v521, %v525
  %v530 = vand.u32 2147483647, %v334
  %vm531 = vcmp.eq.f32.partialorder %v530, 8.507059e+37
  %v532 = vand.u32 %v334, 2147483648
  %v533 = vor.u32 1.1754944e-38, %v532
  %v534 = vsel %vm531, %v533, %v529
  %v535 = vmul.f32 1.0, %v534
  %v536 = vrcp.pop %v336
  %v537 = vmul.f32 %v336, %v536
  %v538 = vsub.f32 1.0, %v537
  %v539 = vmul.f32 %v536, %v538
  %v540 = vadd.f32 %v536, %v539
  %vm541 = vweird.f32 %v336
  %vm542 = vweird.f32 %v536
  %vm543 = vmor %vm541, %vm542
  %v544 = vsel %vm543, %v536, %v540
  %v545 = vand.u32 2147483647, %v336
  %vm546 = vcmp.eq.f32.partialorder %v545, 8.507059e+37
  %v547 = vand.u32 %v336, 2147483648
  %v548 = vor.u32 1.1754944e-38, %v547
  %v549 = vsel %vm546, %v548, %v544
  %v550 = vmul.f32 1.0, %v549
  %v551 = vrcp.pop %v338
  %v552 = vmul.f32 %v338, %v551
  %v553 = vsub.f32 1.0, %v552
  %v554 = vmul.f32 %v551, %v553
  %v555 = vadd.f32 %v551, %v554
  %vm556 = vweird.f32 %v338
  %vm557 = vweird.f32 %v551
  %vm558 = vmor %vm556, %vm557
  %v559 = vsel %vm558, %v551, %v555
  %v560 = vand.u32 2147483647, %v338
  %vm561 = vcmp.eq.f32.partialorder %v560, 8.507059e+37
  %v562 = vand.u32 %v338, 2147483648
  %v563 = vor.u32 1.1754944e-38, %v562
  %v564 = vsel %vm561, %v563, %v559
  %v565 = vmul.f32 1.0, %v564
  %v566 = vrcp.pop %v340
  %v567 = vmul.f32 %v340, %v566
  %v568 = vsub.f32 1.0, %v567
  %v569 = vmul.f32 %v566, %v568
  %v570 = vadd.f32 %v566, %v569
  %vm571 = vweird.f32 %v340
  %vm572 = vweird.f32 %v566
  %vm573 = vmor %vm571, %vm572
  %v574 = vsel %vm573, %v566, %v570
  %v575 = vand.u32 2147483647, %v340
  %vm576 = vcmp.eq.f32.partialorder %v575, 8.507059e+37
  %v577 = vand.u32 %v340, 2147483648
  %v578 = vor.u32 1.1754944e-38, %v577
  %v579 = vsel %vm576, %v578, %v574
  %v580 = vmul.f32 1.0, %v579
  %v581 = vpack.c.bf16 %v280, %v278
  %v582 = vpack.c.bf16 %v284, %v282
  %v583 = vpack.c.bf16 %v288, %v286
  %v584 = vpack.c.bf16 %v292, %v290
  %v585 = vpack.c.bf16 %v296, %v294
  %v586 = vpack.c.bf16 %v300, %v298
  %v587 = vpack.c.bf16 %v304, %v302
  %v588 = vpack.c.bf16 %v308, %v306
  %v589 = vld [vmem:[%s3] sm:$0xf]
  %v590 = vld [vmem:[%s3 + $0x4] sm:$0xf]
  %v591 = vld [vmem:[%s3 + $0x8] sm:$0xf]
  %v592 = vld [vmem:[%s3 + $0xc] sm:$0xf]
  %v593 = vld [vmem:[%s3 + $0x10] sm:$0xf]
  %v594 = vld [vmem:[%s3 + $0x14] sm:$0xf]
  %v595 = vld [vmem:[%s3 + $0x18] sm:$0xf]
  %v596 = vld [vmem:[%s3 + $0x1c] sm:$0xf]
  %v597 = vld [vmem:[%s3 + $0x20] sm:$0xf]
  %v598 = vld [vmem:[%s3 + $0x24] sm:$0xf]
  %v599 = vld [vmem:[%s3 + $0x28] sm:$0xf]
  %v600 = vld [vmem:[%s3 + $0x2c] sm:$0xf]
  %v601 = vld [vmem:[%s3 + $0x30] sm:$0xf]
  %v602 = vld [vmem:[%s3 + $0x34] sm:$0xf]
  %v603 = vld [vmem:[%s3 + $0x38] sm:$0xf]
  %v604 = vld [vmem:[%s3 + $0x3c] sm:$0xf]
  %v621 = vunpack.c.l.b16 %v589
  %v622 = vunpack.c.l.b16 %v590
  %v623 = vunpack.c.l.b16 %v591
  %v624 = vunpack.c.l.b16 %v592
  %v625 = vunpack.c.l.b16 %v593
  %v626 = vunpack.c.l.b16 %v594
  %v627 = vunpack.c.l.b16 %v595
  %v628 = vunpack.c.l.b16 %v596
  %v629 = vunpack.c.l.b16 %v597
  %v630 = vunpack.c.l.b16 %v598
  %v631 = vunpack.c.l.b16 %v599
  %v632 = vunpack.c.l.b16 %v600
  %v633 = vunpack.c.l.b16 %v601
  %v634 = vunpack.c.l.b16 %v602
  %v635 = vunpack.c.l.b16 %v603
  %v636 = vunpack.c.l.b16 %v604
  %v637 = vpack.c.b16 %v622, %v621
  %v638 = vpack.c.b16 %v624, %v623
  %v639 = vpack.c.b16 %v626, %v625
  %v640 = vpack.c.b16 %v628, %v627
  %v641 = vpack.c.b16 %v630, %v629
  %v642 = vpack.c.b16 %v632, %v631
  %v643 = vpack.c.b16 %v634, %v633
  %v644 = vpack.c.b16 %v636, %v635
  %653 = vmatpush.bf16.msra.mxu0 %v644
  %654 = vmatpush.bf16.msra.mxu0 %v643
  %655 = vmatpush.bf16.msra.mxu0 %v642
  %656 = vmatpush.bf16.msra.mxu0 %v641
  %657 = vmatpush.bf16.msra.mxu0 %v640
  %658 = vmatpush.bf16.msra.mxu0 %v639
  %659 = vmatpush.bf16.msra.mxu0 %v638
  %660 = vmatpush.bf16.msra.mxu0 %v637
  %661 = vmatmul.bf16.gmra.mxu0 %v581
  %v662 = vpop.f32.mrf.mxu0
  %v663 = vadd.f32 0.0, %v662
  %v664 = vpop.f32.mrf.mxu0
  %v665 = vadd.f32 0.0, %v664
  %666 = vmatmul.bf16.gmra.mxu0 %v582
  %v667 = vpop.f32.mrf.mxu0
  %v668 = vadd.f32 0.0, %v667
  %v669 = vpop.f32.mrf.mxu0
  %v670 = vadd.f32 0.0, %v669
  %671 = vmatmul.bf16.gmra.mxu0 %v583
  %v672 = vpop.f32.mrf.mxu0
  %v673 = vadd.f32 0.0, %v672
  %v674 = vpop.f32.mrf.mxu0
  %v675 = vadd.f32 0.0, %v674
  %676 = vmatmul.bf16.gmra.mxu0 %v584
  %v677 = vpop.f32.mrf.mxu0
  %v678 = vadd.f32 0.0, %v677
  %v679 = vpop.f32.mrf.mxu0
  %v680 = vadd.f32 0.0, %v679
  %681 = vmatmul.bf16.gmra.mxu0 %v585
  %v682 = vpop.f32.mrf.mxu0
  %v683 = vadd.f32 0.0, %v682
  %v684 = vpop.f32.mrf.mxu0
  %v685 = vadd.f32 0.0, %v684
  %686 = vmatmul.bf16.gmra.mxu0 %v586
  %v687 = vpop.f32.mrf.mxu0
  %v688 = vadd.f32 0.0, %v687
  %v689 = vpop.f32.mrf.mxu0
  %v690 = vadd.f32 0.0, %v689
  %691 = vmatmul.bf16.gmra.mxu0 %v587
  %v692 = vpop.f32.mrf.mxu0
  %v693 = vadd.f32 0.0, %v692
  %v694 = vpop.f32.mrf.mxu0
  %v695 = vadd.f32 0.0, %v694
  %696 = vmatmul.bf16.gmra.mxu0 %v588
  %v697 = vpop.f32.mrf.mxu0
  %v698 = vadd.f32 0.0, %v697
  %v699 = vpop.f32.mrf.mxu0
  %v700 = vadd.f32 0.0, %v699
  %701 = vdwg.mxu0
  %v702 = vmul.f32 %v663, %v355
  %v703 = vmul.f32 %v665, %v370
  %v704 = vmul.f32 %v668, %v385
  %v705 = vmul.f32 %v670, %v400
  %v706 = vmul.f32 %v673, %v415
  %v707 = vmul.f32 %v675, %v430
  %v708 = vmul.f32 %v678, %v445
  %v709 = vmul.f32 %v680, %v460
  %v710 = vmul.f32 %v683, %v475
  %v711 = vmul.f32 %v685, %v490
  %v712 = vmul.f32 %v688, %v505
  %v713 = vmul.f32 %v690, %v520
  %v714 = vmul.f32 %v693, %v535
  %v715 = vmul.f32 %v695, %v550
  %v716 = vmul.f32 %v698, %v565
  %v717 = vmul.f32 %v700, %v580
  %vm718 = vcmp.gt.f32.partialorder %v702, 0.0
  %vm719 = vcmp.gt.f32.partialorder %v703, 0.0
  %vm720 = vcmp.gt.f32.partialorder %v704, 0.0
  %vm721 = vcmp.gt.f32.partialorder %v705, 0.0
  %vm722 = vcmp.gt.f32.partialorder %v706, 0.0
  %vm723 = vcmp.gt.f32.partialorder %v707, 0.0
  %vm724 = vcmp.gt.f32.partialorder %v708, 0.0
  %vm725 = vcmp.gt.f32.partialorder %v709, 0.0
  %vm726 = vcmp.gt.f32.partialorder %v710, 0.0
  %vm727 = vcmp.gt.f32.partialorder %v711, 0.0
  %vm728 = vcmp.gt.f32.partialorder %v712, 0.0
  %vm729 = vcmp.gt.f32.partialorder %v713, 0.0
  %vm730 = vcmp.gt.f32.partialorder %v714, 0.0
  %vm731 = vcmp.gt.f32.partialorder %v715, 0.0
  %vm732 = vcmp.gt.f32.partialorder %v716, 0.0
  %vm733 = vcmp.gt.f32.partialorder %v717, 0.0
  %v734 = vmin.f32 %v702, 0.0
  %v735 = vmin.f32 %v703, 0.0
  %v736 = vmin.f32 %v704, 0.0
  %v737 = vmin.f32 %v705, 0.0
  %v738 = vmin.f32 %v706, 0.0
  %v739 = vmin.f32 %v707, 0.0
  %v740 = vmin.f32 %v708, 0.0
  %v741 = vmin.f32 %v709, 0.0
  %v742 = vmin.f32 %v710, 0.0
  %v743 = vmin.f32 %v711, 0.0
  %v744 = vmin.f32 %v712, 0.0
  %v745 = vmin.f32 %v713, 0.0
  %v746 = vmin.f32 %v714, 0.0
  %v747 = vmin.f32 %v715, 0.0
  %v748 = vmin.f32 %v716, 0.0
  %v749 = vmin.f32 %v717, 0.0
  %v750 = vmul.f32 %v734, 1.442695
  %v751 = vpow.pop %v750
  %v752 = vmul.f32 %v735, 1.442695
  %v753 = vpow.pop %v752
  %v754 = vmul.f32 %v736, 1.442695
  %v755 = vpow.pop %v754
  %v756 = vmul.f32 %v737, 1.442695
  %v757 = vpow.pop %v756
  %v758 = vmul.f32 %v738, 1.442695
  %v759 = vpow.pop %v758
  %v760 = vmul.f32 %v739, 1.442695
  %v761 = vpow.pop %v760
  %v762 = vmul.f32 %v740, 1.442695
  %v763 = vpow.pop %v762
  %v764 = vmul.f32 %v741, 1.442695
  %v765 = vpow.pop %v764
  %v766 = vmul.f32 %v742, 1.442695
  %v767 = vpow.pop %v766
  %v768 = vmul.f32 %v743, 1.442695
  %v769 = vpow.pop %v768
  %v770 = vmul.f32 %v744, 1.442695
  %v771 = vpow.pop %v770
  %v772 = vmul.f32 %v745, 1.442695
  %v773 = vpow.pop %v772
  %v774 = vmul.f32 %v746, 1.442695
  %v775 = vpow.pop %v774
  %v776 = vmul.f32 %v747, 1.442695
  %v777 = vpow.pop %v776
  %v778 = vmul.f32 %v748, 1.442695
  %v779 = vpow.pop %v778
  %v780 = vmul.f32 %v749, 1.442695
  %v781 = vpow.pop %v780
  %v782 = vsub.f32 %v751, 1.0
  %v783 = vsub.f32 %v753, 1.0
  %v784 = vsub.f32 %v755, 1.0
  %v785 = vsub.f32 %v757, 1.0
  %v786 = vsub.f32 %v759, 1.0
  %v787 = vsub.f32 %v761, 1.0
  %v788 = vsub.f32 %v763, 1.0
  %v789 = vsub.f32 %v765, 1.0
  %v790 = vsub.f32 %v767, 1.0
  %v791 = vsub.f32 %v769, 1.0
  %v792 = vsub.f32 %v771, 1.0
  %v793 = vsub.f32 %v773, 1.0
  %v794 = vsub.f32 %v775, 1.0
  %v795 = vsub.f32 %v777, 1.0
  %v796 = vsub.f32 %v779, 1.0
  %v797 = vsub.f32 %v781, 1.0
  %v798 = vsel %vm718, %v702, %v782
  %v799 = vsel %vm719, %v703, %v783
  %v800 = vsel %vm720, %v704, %v784
  %v801 = vsel %vm721, %v705, %v785
  %v802 = vsel %vm722, %v706, %v786
  %v803 = vsel %vm723, %v707, %v787
  %v804 = vsel %vm724, %v708, %v788
  %v805 = vsel %vm725, %v709, %v789
  %v806 = vsel %vm726, %v710, %v790
  %v807 = vsel %vm727, %v711, %v791
  %v808 = vsel %vm728, %v712, %v792
  %v809 = vsel %vm729, %v713, %v793
  %v810 = vsel %vm730, %v714, %v794
  %v811 = vsel %vm731, %v715, %v795
  %v812 = vsel %vm732, %v716, %v796
  %v813 = vsel %vm733, %v717, %v797
  %814 = vst [vmem:[%s4] sm:$0xff] %v798
  %815 = vst [vmem:[%s4 + $0x8] sm:$0xff] %v799
  %816 = vst [vmem:[%s4 + $0x10] sm:$0xff] %v800
  %817 = vst [vmem:[%s4 + $0x18] sm:$0xff] %v801
  %818 = vst [vmem:[%s4 + $0x20] sm:$0xff] %v802
  %819 = vst [vmem:[%s4 + $0x28] sm:$0xff] %v803
  %820 = vst [vmem:[%s4 + $0x30] sm:$0xff] %v804
  %821 = vst [vmem:[%s4 + $0x38] sm:$0xff] %v805
  %822 = vst [vmem:[%s4 + $0x40] sm:$0xff] %v806
  %823 = vst [vmem:[%s4 + $0x48] sm:$0xff] %v807
  %824 = vst [vmem:[%s4 + $0x50] sm:$0xff] %v808
  %825 = vst [vmem:[%s4 + $0x58] sm:$0xff] %v809
  %826 = vst [vmem:[%s4 + $0x60] sm:$0xff] %v810
  %827 = vst [vmem:[%s4 + $0x68] sm:$0xff] %v811
  %828 = vst [vmem:[%s4 + $0x70] sm:$0xff] %v812
  %829 = vst [vmem:[%s4 + $0x78] sm:$0xff] %v813
  // Predicated region
  $region18: #{_lambda_.7} parent=0 // pred_check
    _
  $region19: #{_lambda_.7} parent=0 // pred_check_branch
    %831 = sbr.rel (0) target = $region21
  $region20: #{_lambda_.7} parent=0 // pred_region
    _
  $region21: #{_lambda_.7} parent=0 // pred_fallthru
    _
  // Predicated region
  $region22: #{_lambda_.7} parent=0 // pred_check
    _
  $region23: #{_lambda_.7} parent=0 // pred_check_branch
    %833 = sbr.rel (0) target = $region25
  $region24: #{_lambda_.7} parent=0 // pred_region
    _
  $region25: #{_lambda_.7} parent=0 // pred_fallthru
    _

</llo_original>
